<compile_context>
chip_gen: v5e
topology: v5e:2x2
jax: 0.10.0
libtpu: 0.0.40
codegen_flags: <defaults>
</compile_context>

<pallas_src>
import math

import jax
import jax.numpy as jnp
from jax import lax
from jax.experimental import pallas as pl
from jax.experimental.pallas import tpu as pltpu


# ----------------------------- Pallas kernel ------------------------------ #
def _ingram_rel_kernel(hidx_ref, head_ref, bin_ref, tail_ref,
                       wh_ref, wb_ref, wt_ref, ba_ref, vec_ref,
                       wg_ref, bg_ref, sel_ref,
                       out_ref,
                       m_sc, l_sc):
    j = pl.program_id(0)                      # edge-tile (reduction) axis
    r_pad = out_ref.shape[0]
    t_tile = hidx_ref.shape[1]

    @pl.when(j == 0)
    def _init():
        m_sc[...] = jnp.full_like(m_sc, -1e30)     # running per-head max [1, H]
        l_sc[...] = jnp.zeros_like(l_sc)           # running exp-sum      [R, H]
        out_ref[...] = jnp.zeros_like(out_ref)     # weighted aggregate   [R, D]

    sel = sel_ref[...]                                                   # [D, H]

    # ---- per-edge projections: bf16 operands on the MXU, f32 accumulation ----
    # split-weight form of attn_proj(concat([head|bin|tail]))
    a = (jnp.dot(head_ref[...], wh_ref[...], preferred_element_type=jnp.float32)
         + jnp.dot(bin_ref[...], wb_ref[...], preferred_element_type=jnp.float32)
         + jnp.dot(tail_ref[...], wt_ref[...], preferred_element_type=jnp.float32)
         + ba_ref[...])                                                  # [T_t, D]
    a = jnp.where(a > 0, a, 0.2 * a)                                     # LeakyReLU(0.2)

    # per-head score: (act(.) * attn_vec) summed within each head == (a*vec) @ sel
    raw = jnp.dot(a * vec_ref[...], sel,
                  preferred_element_type=jnp.float32)                    # [T_t, H]

    aggr = jnp.dot(tail_ref[...], wg_ref[...],
                   preferred_element_type=jnp.float32) + bg_ref[...]     # [T_t, D]

    # ---- online softmax shift: per-head running max + rescale (shift-invariant
    #      wrt the reference's per-relation amax, so results are identical) ----
    tile_max = jnp.max(raw, axis=0, keepdims=True)                       # [1, H]
    m_new = jnp.maximum(m_sc[...], tile_max)                             # [1, H]
    scale = jnp.exp(m_sc[...] - m_new)                                   # [1, H]
    scale_full = lax.dot_general(scale, sel, (((1,), (1,)), ((), ())),
                                 preferred_element_type=jnp.float32)     # [1, D]
    m_sc[...] = m_new
    l_sc[...] = l_sc[...] * scale
    out_ref[...] = out_ref[...] * scale_full

    p = jnp.exp(raw - m_new)                                             # [T_t, H]
    p_full = lax.dot_general(p, sel, (((1,), (1,)), ((), ())),
                             preferred_element_type=jnp.float32)         # [T_t, D]

    # ---- 0/1 incidence tile built in-kernel from the head-index vector ----
    rows = lax.broadcasted_iota(jnp.int32, (r_pad, t_tile), 0)
    hmat = (hidx_ref[...] == rows).astype(jnp.float32)                   # [R, T_t]

    # segment exp-sum and weighted scatter-add via the incidence matmuls
    l_sc[...] = l_sc[...] + jnp.dot(hmat, p,
                                    preferred_element_type=jnp.float32)  # [R, H]
    out_ref[...] = out_ref[...] + jnp.dot(hmat, p_full * aggr,
                                          preferred_element_type=jnp.float32)

    @pl.when(j == pl.num_programs(0) - 1)
    def _finalize():
        l_full = lax.dot_general(l_sc[...], sel, (((1,), (1,)), ((), ())),
                                 preferred_element_type=jnp.float32)     # [R, D]
        out_ref[...] = out_ref[...] * pl.reciprocal(l_full + 1e-16, approx=True)


# ------------------------------- wrapper ---------------------------------- #
def ingram_relation_layer_v2(emb_rel, emb_bin, relation_triplets, params,
                             num_head, *, t_tile=512):
    num_rel, dim_in = emb_rel.shape
    dim_bin = emb_bin.shape[1]
    dim_out = params["w_attn"].shape[1]
    dim_hid = dim_out // num_head
    assert dim_out == dim_hid * num_head
    assert params["w_attn"].shape[0] == 2 * dim_in + dim_bin
    T = relation_triplets.shape[0]

    head_idxs = relation_triplets[:, 0].astype(jnp.int32)
    tail_idxs = relation_triplets[:, 1].astype(jnp.int32)
    bin_idxs = relation_triplets[:, 2].astype(jnp.int32)

    # ---- glue: gathers + padding in plain JAX (no concat, no dense hmat) ----
    # TODO(synk): per-row dynamic gather of the embedding tables has no clean /
    # efficient in-kernel Pallas TPU equivalent at this granularity, so it stays
    # as an XLA gather in the wrapper.
    head_emb = emb_rel[head_idxs].astype(jnp.bfloat16)
    tail_emb = emb_rel[tail_idxs].astype(jnp.bfloat16)
    bin_emb = emb_bin[bin_idxs].astype(jnp.bfloat16)

    t_pad = pl.cdiv(T, t_tile) * t_tile
    r_pad = pl.cdiv(num_rel, 8) * 8
    pad_t = t_pad - T
    head_emb = jnp.pad(head_emb, ((0, pad_t), (0, 0)))
    tail_emb = jnp.pad(tail_emb, ((0, pad_t), (0, 0)))
    bin_emb = jnp.pad(bin_emb, ((0, pad_t), (0, 0)))
    # padded edges get head index -1 -> all-zero incidence column (no effect)
    hidx = jnp.pad(head_idxs, (0, pad_t), constant_values=-1).reshape(1, t_pad)

    # split attn weight along the [head | bin | tail] concat layout
    w_attn = params["w_attn"]
    w_h = w_attn[:dim_in].astype(jnp.bfloat16)
    w_b = w_attn[dim_in:dim_in + dim_bin].astype(jnp.bfloat16)
    w_t = w_attn[dim_in + dim_bin:].astype(jnp.bfloat16)
    w_g = params["w_aggr"].astype(jnp.bfloat16)

    # head-selection matrix: sel[d, h] = 1 iff channel d belongs to head h
    sel = (jnp.arange(dim_out)[:, None] // dim_hid ==
           jnp.arange(num_head)[None, :]).astype(jnp.float32)            # [D, H]

    n_t = t_pad // t_tile

    def const2d(shape):
        return pl.BlockSpec(shape, lambda j: (0, 0))

    flops = int(
        2 * t_pad * (2 * dim_in + dim_bin) * dim_out      # attn projection
        + 2 * t_pad * dim_in * dim_out                    # aggr projection
        + 4 * t_pad * dim_out * num_head                  # head-sum / expand
        + 2 * r_pad * t_pad * (num_head + dim_out))       # segment matmuls
    bytes_accessed = int(
        t_pad * (2 * dim_in + dim_bin) * 2                # bf16 edge features
        + t_pad * 4                                       # head indices
        + (w_h.size + w_b.size + w_t.size + w_g.size) * 2
        + (3 * dim_out + dim_out * num_head) * 4
        + r_pad * dim_out * 4)
    cost = pl.CostEstimate(flops=flops,
                           transcendentals=int(t_pad * num_head),
                           bytes_accessed=bytes_accessed)

    out = pl.pallas_call(
        _ingram_rel_kernel,
        out_shape=jax.ShapeDtypeStruct((r_pad, dim_out), jnp.float32),
        grid=(n_t,),
        in_specs=[
            pl.BlockSpec((1, t_tile), lambda j: (0, j)),          # head idx
            pl.BlockSpec((t_tile, dim_in), lambda j: (j, 0)),     # head emb
            pl.BlockSpec((t_tile, dim_bin), lambda j: (j, 0)),    # bin emb
            pl.BlockSpec((t_tile, dim_in), lambda j: (j, 0)),     # tail emb
            const2d((dim_in, dim_out)),                           # w_attn[head]
            const2d((dim_bin, dim_out)),                          # w_attn[bin]
            const2d((dim_in, dim_out)),                           # w_attn[tail]
            const2d((1, dim_out)),                                # b_attn
            const2d((1, dim_out)),                                # attn_vec
            const2d((dim_in, dim_out)),                           # w_aggr
            const2d((1, dim_out)),                                # b_aggr
            const2d((dim_out, num_head)),                         # sel
        ],
        out_specs=pl.BlockSpec((r_pad, dim_out), lambda j: (0, 0)),
        scratch_shapes=[
            pltpu.VMEM((1, num_head), jnp.float32),      # running per-head max
            pltpu.VMEM((r_pad, num_head), jnp.float32),  # running exp-sum
        ],
        compiler_params=pltpu.CompilerParams(
            dimension_semantics=("arbitrary",),
            vmem_limit_bytes=32 * 1024 * 1024),
        cost_estimate=cost,
    )(hidx, head_emb, bin_emb, tail_emb,
      w_h, w_b, w_t, params["b_attn"], params["attn_vec_flat"],
      w_g, params["b_aggr"], sel)

    return out[:num_rel]


# ----------------------- deterministic parameter init --------------------- #
def init_params(key, dim_in_rel, dim_out_rel, num_head):
    dim_hid = dim_out_rel // num_head
    gain = math.sqrt(2.0)  # calculate_gain('relu')
    k1, k2, k3 = jax.random.split(key, 3)

    std_a = gain * math.sqrt(2.0 / (3 * dim_out_rel + dim_out_rel))
    w_attn = std_a * jax.random.normal(k1, (3 * dim_out_rel, dim_out_rel),
                                       jnp.float32)
    std_v = gain * math.sqrt(2.0 / (num_head * dim_hid + dim_hid))
    attn_vec = std_v * jax.random.normal(k2, (1, num_head, dim_hid), jnp.float32)
    std_g = gain * math.sqrt(2.0 / (dim_in_rel + dim_out_rel))
    w_aggr = std_g * jax.random.normal(k3, (dim_in_rel, dim_out_rel), jnp.float32)

    return {
        "w_attn": w_attn,
        "b_attn": jnp.zeros((1, dim_out_rel), jnp.float32),
        "attn_vec_flat": attn_vec.reshape(1, dim_out_rel),
        "w_aggr": w_aggr,
        "b_aggr": jnp.zeros((1, dim_out_rel), jnp.float32),
    }


# ------------------------------ reference --------------------------------- #
def reference_forward(emb_rel, emb_bin, triplets, params, num_head,
                      mxu_dtype=None):
    """Pure-JAX reference mirroring the PyTorch module. If mxu_dtype is set, the
    projection operands are quantized the same way the kernel feeds the MXU, so
    the comparison isolates kernel logic from dtype rounding."""
    num_rel, dim_out = emb_rel.shape[0], params["w_attn"].shape[1]
    dim_hid = dim_out // num_head
    h, t, b = triplets[:, 0], triplets[:, 1], triplets[:, 2]
    concat = jnp.concatenate([emb_rel[h], emb_bin[b], emb_rel[t]], axis=-1)
    tail = emb_rel[t]
    w_attn, w_aggr = params["w_attn"], params["w_aggr"]
    if mxu_dtype is not None:
        q = lambda x: x.astype(mxu_dtype).astype(jnp.float32)
        concat, tail, w_attn, w_aggr = q(concat), q(tail), q(w_attn), q(w_aggr)
    a = concat @ w_attn + params["b_attn"]
    a = jnp.where(a > 0, a, 0.2 * a).reshape(-1, num_head, dim_hid)
    raw = (a * params["attn_vec_flat"].reshape(1, num_head, dim_hid)).sum(-1)
    seg_max = jax.ops.segment_max(raw, h, num_segments=num_rel)
    seg_max = jnp.where(jnp.isfinite(seg_max), seg_max, 0.0)
    attn = jnp.exp(raw - seg_max[h])
    sums = jax.ops.segment_sum(attn, h, num_segments=num_rel)
    beta = attn / (sums[h] + 1e-16)
    aggr = (tail @ w_aggr + params["b_aggr"]).reshape(-1, num_head, dim_hid)
    out = jax.ops.segment_sum(beta[..., None] * aggr, h, num_segments=num_rel)
    return out.reshape(num_rel, dim_out)


# --------------------------------- main ------------------------------------ #
if __name__ == "__main__":
    NUM_REL, NUM_BIN, NUM_TRIPLETS = 16, 4, 200
    DIM_IN_REL = DIM_OUT_REL = 32
    NUM_HEAD = 8

    key = jax.random.PRNGKey(0)
    k_rel, k_bin, k_h, k_t, k_b, k_p = jax.random.split(key, 6)

    emb_rel = jax.random.normal(k_rel, (NUM_REL, DIM_IN_REL), jnp.float32)
    emb_bin = jax.random.normal(k_bin, (NUM_BIN, DIM_OUT_REL), jnp.float32)
    relation_triplets = jnp.stack(
        [jax.random.randint(k_h, (NUM_TRIPLETS,), 0, NUM_REL),
         jax.random.randint(k_t, (NUM_TRIPLETS,), 0, NUM_REL),
         jax.random.randint(k_b, (NUM_TRIPLETS,), 0, NUM_BIN)], axis=1)

    params = init_params(k_p, DIM_IN_REL, DIM_OUT_REL, NUM_HEAD)

    # t_tile=128 -> grid (2,): exercises the sequential online-softmax
    # accumulation across edge tiles with the full R output resident in VMEM.
    out = ingram_relation_layer_v2(emb_rel, emb_bin, relation_triplets,
                                   params, NUM_HEAD, t_tile=128)
    out = jax.block_until_ready(out)

    # Reference mirrors the bf16 MXU operand quantization; remaining diff comes
    # from summation order + pl.reciprocal(approx=True) (~2^-12 rel).
    ref = reference_forward(emb_rel, emb_bin, relation_triplets, params,
                            NUM_HEAD, mxu_dtype=jnp.bfloat16)
    assert out.shape == (NUM_REL, DIM_OUT_REL)
    max_err = float(jnp.max(jnp.abs(out - ref)))
    assert jnp.allclose(out, ref, atol=3e-3, rtol=3e-3), max_err

    print("KERNEL_OK")
</pallas_src>

<mosaic_0001>
module attributes {stable_mosaic.version = 11 : i64} {
  func.func @_ingram_rel_kernel(%arg0: i32, %arg1: memref<1x128xi32, #tpu.memory_space<vmem>>, %arg2: memref<128x32xbf16, #tpu.memory_space<vmem>>, %arg3: memref<128x32xbf16, #tpu.memory_space<vmem>>, %arg4: memref<128x32xbf16, #tpu.memory_space<vmem>>, %arg5: memref<32x32xbf16, #tpu.memory_space<vmem>>, %arg6: memref<32x32xbf16, #tpu.memory_space<vmem>>, %arg7: memref<32x32xbf16, #tpu.memory_space<vmem>>, %arg8: memref<1x32xf32, #tpu.memory_space<vmem>>, %arg9: memref<1x32xf32, #tpu.memory_space<vmem>>, %arg10: memref<32x32xbf16, #tpu.memory_space<vmem>>, %arg11: memref<1x32xf32, #tpu.memory_space<vmem>>, %arg12: memref<32x8xf32, #tpu.memory_space<vmem>>, %arg13: memref<16x32xf32, #tpu.memory_space<vmem>>, %arg14: memref<1x8xf32, #tpu.memory_space<vmem>>, %arg15: memref<16x8xf32, #tpu.memory_space<vmem>>) attributes {dimension_semantics = [#tpu.dimension_semantics<arbitrary>], iteration_bounds = array<i64: 2>, scalar_prefetch = 0 : i64, scratch_operands = 2 : i64, tpu.core_type = #tpu.core_type<tc>, window_params = [{transform_indices = @transform_0, window_bounds = array<i64: 1, 128>}, {transform_indices = @transform_1, window_bounds = array<i64: 128, 32>}, {transform_indices = @transform_2, window_bounds = array<i64: 128, 32>}, {transform_indices = @transform_3, window_bounds = array<i64: 128, 32>}, {pipeline_mode = #tpu.pipeline_mode<synchronous>, transform_indices = @transform_4, window_bounds = array<i64: 32, 32>}, {pipeline_mode = #tpu.pipeline_mode<synchronous>, transform_indices = @transform_5, window_bounds = array<i64: 32, 32>}, {pipeline_mode = #tpu.pipeline_mode<synchronous>, transform_indices = @transform_6, window_bounds = array<i64: 32, 32>}, {pipeline_mode = #tpu.pipeline_mode<synchronous>, transform_indices = @transform_7, window_bounds = array<i64: 1, 32>}, {pipeline_mode = #tpu.pipeline_mode<synchronous>, transform_indices = @transform_8, window_bounds = array<i64: 1, 32>}, {pipeline_mode = #tpu.pipeline_mode<synchronous>, transform_indices = @transform_9, window_bounds = array<i64: 32, 32>}, {pipeline_mode = #tpu.pipeline_mode<synchronous>, transform_indices = @transform_10, window_bounds = array<i64: 1, 32>}, {pipeline_mode = #tpu.pipeline_mode<synchronous>, transform_indices = @transform_11, window_bounds = array<i64: 32, 8>}, {pipeline_mode = #tpu.pipeline_mode<synchronous>, transform_indices = @transform_12, window_bounds = array<i64: 16, 32>}]} {
    %c0_i32 = arith.constant 0 : i32
    %0 = arith.cmpi eq, %arg0, %c0_i32 : i32
    %1 = arith.extui %0 : i1 to i32
    %c0_i32_0 = arith.constant 0 : i32
    %2 = arith.cmpi ne, %1, %c0_i32_0 : i32
    scf.if %2 {
      %cst_60 = arith.constant -1.000000e+30 : f32
      %72 = vector.broadcast %cst_60 : f32 to vector<1x8xf32>
      %c0_61 = arith.constant 0 : index
      %c0_62 = arith.constant 0 : index
      %73 = vector.load %arg14[%c0_61, %c0_62] : memref<1x8xf32, #tpu.memory_space<vmem>>, vector<1x8xf32>
      tpu.vector_store %arg14[%c0_61, %c0_62], %72 {strides = array<i32>} : memref<1x8xf32, #tpu.memory_space<vmem>>, vector<1x8xf32>,
      %cst_63 = arith.constant 0.000000e+00 : f32
      %74 = vector.broadcast %cst_63 : f32 to vector<16x8xf32>
      %c0_64 = arith.constant 0 : index
      %c0_65 = arith.constant 0 : index
      %75 = vector.load %arg15[%c0_64, %c0_65] : memref<16x8xf32, #tpu.memory_space<vmem>>, vector<16x8xf32>
      tpu.vector_store %arg15[%c0_64, %c0_65], %74 {strides = array<i32>} : memref<16x8xf32, #tpu.memory_space<vmem>>, vector<16x8xf32>,
      %cst_66 = arith.constant 0.000000e+00 : f32
      %76 = vector.broadcast %cst_66 : f32 to vector<16x32xf32>
      %c0_67 = arith.constant 0 : index
      %c0_68 = arith.constant 0 : index
      %77 = vector.load %arg13[%c0_67, %c0_68] : memref<16x32xf32, #tpu.memory_space<vmem>>, vector<16x32xf32>
      tpu.vector_store %arg13[%c0_67, %c0_68], %76 {strides = array<i32>} : memref<16x32xf32, #tpu.memory_space<vmem>>, vector<16x32xf32>,
    } else {
    }
    %c0 = arith.constant 0 : index
    %c0_1 = arith.constant 0 : index
    %3 = vector.load %arg12[%c0, %c0_1] : memref<32x8xf32, #tpu.memory_space<vmem>>, vector<32x8xf32>
    %c0_2 = arith.constant 0 : index
    %c0_3 = arith.constant 0 : index
    %4 = vector.load %arg2[%c0_2, %c0_3] : memref<128x32xbf16, #tpu.memory_space<vmem>>, vector<128x32xbf16>
    %c0_4 = arith.constant 0 : index
    %c0_5 = arith.constant 0 : index
    %5 = vector.load %arg5[%c0_4, %c0_5] : memref<32x32xbf16, #tpu.memory_space<vmem>>, vector<32x32xbf16>
    %cst = arith.constant dense<0.000000e+00> : vector<128x32xf32>
    %6 = tpu.matmul %4, %5, %cst {dimension_numbers = #tpu.dot_dimension_numbers<[1], [0], [0], [1], [0, 0, 1, 1], [], []>} : vector<128x32xbf16>, vector<32x32xbf16>, vector<128x32xf32> -> vector<128x32xf32>
    %c0_6 = arith.constant 0 : index
    %c0_7 = arith.constant 0 : index
    %7 = vector.load %arg3[%c0_6, %c0_7] : memref<128x32xbf16, #tpu.memory_space<vmem>>, vector<128x32xbf16>
    %c0_8 = arith.constant 0 : index
    %c0_9 = arith.constant 0 : index
    %8 = vector.load %arg6[%c0_8, %c0_9] : memref<32x32xbf16, #tpu.memory_space<vmem>>, vector<32x32xbf16>
    %cst_10 = arith.constant dense<0.000000e+00> : vector<128x32xf32>
    %9 = tpu.matmul %7, %8, %cst_10 {dimension_numbers = #tpu.dot_dimension_numbers<[1], [0], [0], [1], [0, 0, 1, 1], [], []>} : vector<128x32xbf16>, vector<32x32xbf16>, vector<128x32xf32> -> vector<128x32xf32>
    %10 = arith.addf %6, %9 : vector<128x32xf32>
    %c0_11 = arith.constant 0 : index
    %c0_12 = arith.constant 0 : index
    %11 = vector.load %arg4[%c0_11, %c0_12] : memref<128x32xbf16, #tpu.memory_space<vmem>>, vector<128x32xbf16>
    %c0_13 = arith.constant 0 : index
    %c0_14 = arith.constant 0 : index
    %12 = vector.load %arg7[%c0_13, %c0_14] : memref<32x32xbf16, #tpu.memory_space<vmem>>, vector<32x32xbf16>
    %cst_15 = arith.constant dense<0.000000e+00> : vector<128x32xf32>
    %13 = tpu.matmul %11, %12, %cst_15 {dimension_numbers = #tpu.dot_dimension_numbers<[1], [0], [0], [1], [0, 0, 1, 1], [], []>} : vector<128x32xbf16>, vector<32x32xbf16>, vector<128x32xf32> -> vector<128x32xf32>
    %14 = arith.addf %10, %13 : vector<128x32xf32>
    %c0_16 = arith.constant 0 : index
    %c0_17 = arith.constant 0 : index
    %15 = vector.load %arg8[%c0_16, %c0_17] : memref<1x32xf32, #tpu.memory_space<vmem>>, vector<1x32xf32>
    %16 = vector.broadcast %15 : vector<1x32xf32> to vector<128x32xf32>
    %17 = arith.addf %14, %16 : vector<128x32xf32>
    %cst_18 = arith.constant 0.000000e+00 : f32
    %18 = vector.broadcast %cst_18 : f32 to vector<128x32xf32>
    %19 = arith.cmpf ogt, %17, %18 : vector<128x32xf32>
    %cst_19 = arith.constant 2.000000e-01 : f32
    %20 = vector.broadcast %cst_19 : f32 to vector<128x32xf32>
    %21 = arith.mulf %20, %17 : vector<128x32xf32>
    %22 = arith.select %19, %17, %21 : vector<128x32xi1>, vector<128x32xf32>
    %c0_20 = arith.constant 0 : index
    %c0_21 = arith.constant 0 : index
    %23 = vector.load %arg9[%c0_20, %c0_21] : memref<1x32xf32, #tpu.memory_space<vmem>>, vector<1x32xf32>
    %24 = vector.broadcast %23 : vector<1x32xf32> to vector<128x32xf32>
    %25 = arith.mulf %22, %24 : vector<128x32xf32>
    %cst_22 = arith.constant dense<0.000000e+00> : vector<128x8xf32>
    %26 = tpu.matmul %25, %3, %cst_22 {dimension_numbers = #tpu.dot_dimension_numbers<[1], [0], [0], [1], [0, 0, 1, 1], [], []>} : vector<128x32xf32>, vector<32x8xf32>, vector<128x8xf32> -> vector<128x8xf32>
    %c0_23 = arith.constant 0 : index
    %c0_24 = arith.constant 0 : index
    %27 = vector.load %arg4[%c0_23, %c0_24] : memref<128x32xbf16, #tpu.memory_space<vmem>>, vector<128x32xbf16>
    %c0_25 = arith.constant 0 : index
    %c0_26 = arith.constant 0 : index
    %28 = vector.load %arg10[%c0_25, %c0_26] : memref<32x32xbf16, #tpu.memory_space<vmem>>, vector<32x32xbf16>
    %cst_27 = arith.constant dense<0.000000e+00> : vector<128x32xf32>
    %29 = tpu.matmul %27, %28, %cst_27 {dimension_numbers = #tpu.dot_dimension_numbers<[1], [0], [0], [1], [0, 0, 1, 1], [], []>} : vector<128x32xbf16>, vector<32x32xbf16>, vector<128x32xf32> -> vector<128x32xf32>
    %c0_28 = arith.constant 0 : index
    %c0_29 = arith.constant 0 : index
    %30 = vector.load %arg11[%c0_28, %c0_29] : memref<1x32xf32, #tpu.memory_space<vmem>>, vector<1x32xf32>
    %31 = vector.broadcast %30 : vector<1x32xf32> to vector<128x32xf32>
    %32 = arith.addf %29, %31 : vector<128x32xf32>
    %cst_30 = arith.constant dense<0xFF800000> : vector<8xf32>
    %33 = vector.multi_reduction <maximumf>, %26, %cst_30 [0] : vector<128x8xf32> to vector<8xf32>
    %34 = vector.shape_cast %33 : vector<8xf32> to vector<1x8xf32>
    %c0_31 = arith.constant 0 : index
    %c0_32 = arith.constant 0 : index
    %35 = vector.load %arg14[%c0_31, %c0_32] : memref<1x8xf32, #tpu.memory_space<vmem>>, vector<1x8xf32>
    %36 = arith.maximumf %35, %34 : vector<1x8xf32>
    %c0_33 = arith.constant 0 : index
    %c0_34 = arith.constant 0 : index
    %37 = vector.load %arg14[%c0_33, %c0_34] : memref<1x8xf32, #tpu.memory_space<vmem>>, vector<1x8xf32>
    %38 = arith.subf %37, %36 : vector<1x8xf32>
    %39 = math.exp %38 : vector<1x8xf32>
    %cst_35 = arith.constant dense<0.000000e+00> : vector<1x32xf32>
    %40 = tpu.matmul %39, %3, %cst_35 {dimension_numbers = #tpu.dot_dimension_numbers<[1], [1], [0], [0], [0, 0, 1, 0], [], []>} : vector<1x8xf32>, vector<32x8xf32>, vector<1x32xf32> -> vector<1x32xf32>
    %c0_36 = arith.constant 0 : index
    %c0_37 = arith.constant 0 : index
    %41 = vector.load %arg14[%c0_36, %c0_37] : memref<1x8xf32, #tpu.memory_space<vmem>>, vector<1x8xf32>
    tpu.vector_store %arg14[%c0_36, %c0_37], %36 {strides = array<i32>} : memref<1x8xf32, #tpu.memory_space<vmem>>, vector<1x8xf32>,
    %c0_38 = arith.constant 0 : index
    %c0_39 = arith.constant 0 : index
    %42 = vector.load %arg15[%c0_38, %c0_39] : memref<16x8xf32, #tpu.memory_space<vmem>>, vector<16x8xf32>
    %43 = vector.broadcast %39 : vector<1x8xf32> to vector<16x8xf32>
    %44 = arith.mulf %42, %43 : vector<16x8xf32>
    %c0_40 = arith.constant 0 : index
    %c0_41 = arith.constant 0 : index
    %45 = vector.load %arg15[%c0_40, %c0_41] : memref<16x8xf32, #tpu.memory_space<vmem>>, vector<16x8xf32>
    tpu.vector_store %arg15[%c0_40, %c0_41], %44 {strides = array<i32>} : memref<16x8xf32, #tpu.memory_space<vmem>>, vector<16x8xf32>,
    %c0_42 = arith.constant 0 : index
    %c0_43 = arith.constant 0 : index
    %46 = vector.load %arg13[%c0_42, %c0_43] : memref<16x32xf32, #tpu.memory_space<vmem>>, vector<16x32xf32>
    %47 = vector.broadcast %40 : vector<1x32xf32> to vector<16x32xf32>
    %48 = arith.mulf %46, %47 : vector<16x32xf32>
    %c0_44 = arith.constant 0 : index
    %c0_45 = arith.constant 0 : index
    %49 = vector.load %arg13[%c0_44, %c0_45] : memref<16x32xf32, #tpu.memory_space<vmem>>, vector<16x32xf32>
    tpu.vector_store %arg13[%c0_44, %c0_45], %48 {strides = array<i32>} : memref<16x32xf32, #tpu.memory_space<vmem>>, vector<16x32xf32>,
    %50 = vector.broadcast %36 : vector<1x8xf32> to vector<128x8xf32>
    %51 = arith.subf %26, %50 : vector<128x8xf32>
    %52 = math.exp %51 : vector<128x8xf32>
    %cst_46 = arith.constant dense<0.000000e+00> : vector<128x32xf32>
    %53 = tpu.matmul %52, %3, %cst_46 {dimension_numbers = #tpu.dot_dimension_numbers<[1], [1], [0], [0], [0, 0, 1, 0], [], []>} : vector<128x8xf32>, vector<32x8xf32>, vector<128x32xf32> -> vector<128x32xf32>
    %54 = tpu.iota {dimensions = array<i32: 0>} : vector<16x128xi32>
    %c0_47 = arith.constant 0 : index
    %c0_48 = arith.constant 0 : index
    %55 = vector.load %arg1[%c0_47, %c0_48] : memref<1x128xi32, #tpu.memory_space<vmem>>, vector<1x128xi32>
    %56 = vector.broadcast %55 : vector<1x128xi32> to vector<16x128xi32>
    %57 = arith.cmpi eq, %56, %54 : vector<16x128xi32>
    %58 = arith.extui %57 : vector<16x128xi1> to vector<16x128xi32>
    %59 = arith.sitofp %58 : vector<16x128xi32> to vector<16x128xf32>
    %c0_49 = arith.constant 0 : index
    %c0_50 = arith.constant 0 : index
    %60 = vector.load %arg15[%c0_49, %c0_50] : memref<16x8xf32, #tpu.memory_space<vmem>>, vector<16x8xf32>
    %cst_51 = arith.constant dense<0.000000e+00> : vector<16x8xf32>
    %61 = tpu.matmul %59, %52, %cst_51 {dimension_numbers = #tpu.dot_dimension_numbers<[1], [0], [0], [1], [0, 0, 1, 1], [], []>} : vector<16x128xf32>, vector<128x8xf32>, vector<16x8xf32> -> vector<16x8xf32>
    %62 = arith.addf %60, %61 : vector<16x8xf32>
    %c0_52 = arith.constant 0 : index
    %c0_53 = arith.constant 0 : index
    %63 = vector.load %arg15[%c0_52, %c0_53] : memref<16x8xf32, #tpu.memory_space<vmem>>, vector<16x8xf32>
    tpu.vector_store %arg15[%c0_52, %c0_53], %62 {strides = array<i32>} : memref<16x8xf32, #tpu.memory_space<vmem>>, vector<16x8xf32>,
    %c0_54 = arith.constant 0 : index
    %c0_55 = arith.constant 0 : index
    %64 = vector.load %arg13[%c0_54, %c0_55] : memref<16x32xf32, #tpu.memory_space<vmem>>, vector<16x32xf32>
    %65 = arith.mulf %53, %32 : vector<128x32xf32>
    %cst_56 = arith.constant dense<0.000000e+00> : vector<16x32xf32>
    %66 = tpu.matmul %59, %65, %cst_56 {dimension_numbers = #tpu.dot_dimension_numbers<[1], [0], [0], [1], [0, 0, 1, 1], [], []>} : vector<16x128xf32>, vector<128x32xf32>, vector<16x32xf32> -> vector<16x32xf32>
    %67 = arith.addf %64, %66 : vector<16x32xf32>
    %c0_57 = arith.constant 0 : index
    %c0_58 = arith.constant 0 : index
    %68 = vector.load %arg13[%c0_57, %c0_58] : memref<16x32xf32, #tpu.memory_space<vmem>>, vector<16x32xf32>
    tpu.vector_store %arg13[%c0_57, %c0_58], %67 {strides = array<i32>} : memref<16x32xf32, #tpu.memory_space<vmem>>, vector<16x32xf32>,
    %c1_i32 = arith.constant 1 : i32
    %69 = arith.cmpi eq, %arg0, %c1_i32 : i32
    %70 = arith.extui %69 : i1 to i32
    %c0_i32_59 = arith.constant 0 : i32
    %71 = arith.cmpi ne, %70, %c0_i32_59 : i32
    scf.if %71 {
      %c0_60 = arith.constant 0 : index
      %c0_61 = arith.constant 0 : index
      %72 = vector.load %arg15[%c0_60, %c0_61] : memref<16x8xf32, #tpu.memory_space<vmem>>, vector<16x8xf32>
      %cst_62 = arith.constant dense<0.000000e+00> : vector<16x32xf32>
      %73 = tpu.matmul %72, %3, %cst_62 {dimension_numbers = #tpu.dot_dimension_numbers<[1], [1], [0], [0], [0, 0, 1, 0], [], []>} : vector<16x8xf32>, vector<32x8xf32>, vector<16x32xf32> -> vector<16x32xf32>
      %c0_63 = arith.constant 0 : index
      %c0_64 = arith.constant 0 : index
      %74 = vector.load %arg13[%c0_63, %c0_64] : memref<16x32xf32, #tpu.memory_space<vmem>>, vector<16x32xf32>
      %cst_65 = arith.constant 1.000000e-16 : f32
      %75 = vector.broadcast %cst_65 : f32 to vector<16x32xf32>
      %76 = arith.addf %73, %75 : vector<16x32xf32>
      %77 = tpu.reciprocal %76 {approx = true} : vector<16x32xf32> -> vector<16x32xf32>
      %78 = arith.mulf %74, %77 : vector<16x32xf32>
      %c0_66 = arith.constant 0 : index
      %c0_67 = arith.constant 0 : index
      %79 = vector.load %arg13[%c0_66, %c0_67] : memref<16x32xf32, #tpu.memory_space<vmem>>, vector<16x32xf32>
      tpu.vector_store %arg13[%c0_66, %c0_67], %78 {strides = array<i32>} : memref<16x32xf32, #tpu.memory_space<vmem>>, vector<16x32xf32>,
    } else {
    }
    return
  }
  func.func @transform_0(%arg0: i32) -> (i32, i32) {
    %c0_i32 = arith.constant 0 : i32
    %c0_i32_0 = arith.constant 0 : i32
    return %c0_i32, %arg0 : i32, i32
  }
  func.func @transform_1(%arg0: i32) -> (i32, i32) {
    %c0_i32 = arith.constant 0 : i32
    %c0_i32_0 = arith.constant 0 : i32
    return %arg0, %c0_i32 : i32, i32
  }
  func.func @transform_2(%arg0: i32) -> (i32, i32) {
    %c0_i32 = arith.constant 0 : i32
    %c0_i32_0 = arith.constant 0 : i32
    return %arg0, %c0_i32 : i32, i32
  }
  func.func @transform_3(%arg0: i32) -> (i32, i32) {
    %c0_i32 = arith.constant 0 : i32
    %c0_i32_0 = arith.constant 0 : i32
    return %arg0, %c0_i32 : i32, i32
  }
  func.func @transform_4(%arg0: i32) -> (i32, i32) {
    %c0_i32 = arith.constant 0 : i32
    %c0_i32_0 = arith.constant 0 : i32
    %c0_i32_1 = arith.constant 0 : i32
    return %c0_i32, %c0_i32_0 : i32, i32
  }
  func.func @transform_5(%arg0: i32) -> (i32, i32) {
    %c0_i32 = arith.constant 0 : i32
    %c0_i32_0 = arith.constant 0 : i32
    %c0_i32_1 = arith.constant 0 : i32
    return %c0_i32, %c0_i32_0 : i32, i32
  }
  func.func @transform_6(%arg0: i32) -> (i32, i32) {
    %c0_i32 = arith.constant 0 : i32
    %c0_i32_0 = arith.constant 0 : i32
    %c0_i32_1 = arith.constant 0 : i32
    return %c0_i32, %c0_i32_0 : i32, i32
  }
  func.func @transform_7(%arg0: i32) -> (i32, i32) {
    %c0_i32 = arith.constant 0 : i32
    %c0_i32_0 = arith.constant 0 : i32
    %c0_i32_1 = arith.constant 0 : i32
    return %c0_i32, %c0_i32_0 : i32, i32
  }
  func.func @transform_8(%arg0: i32) -> (i32, i32) {
    %c0_i32 = arith.constant 0 : i32
    %c0_i32_0 = arith.constant 0 : i32
    %c0_i32_1 = arith.constant 0 : i32
    return %c0_i32, %c0_i32_0 : i32, i32
  }
  func.func @transform_9(%arg0: i32) -> (i32, i32) {
    %c0_i32 = arith.constant 0 : i32
    %c0_i32_0 = arith.constant 0 : i32
    %c0_i32_1 = arith.constant 0 : i32
    return %c0_i32, %c0_i32_0 : i32, i32
  }
  func.func @transform_10(%arg0: i32) -> (i32, i32) {
    %c0_i32 = arith.constant 0 : i32
    %c0_i32_0 = arith.constant 0 : i32
    %c0_i32_1 = arith.constant 0 : i32
    return %c0_i32, %c0_i32_0 : i32, i32
  }
  func.func @transform_11(%arg0: i32) -> (i32, i32) {
    %c0_i32 = arith.constant 0 : i32
    %c0_i32_0 = arith.constant 0 : i32
    %c0_i32_1 = arith.constant 0 : i32
    return %c0_i32, %c0_i32_0 : i32, i32
  }
  func.func @transform_12(%arg0: i32) -> (i32, i32) {
    %c0_i32 = arith.constant 0 : i32
    %c0_i32_0 = arith.constant 0 : i32
    %c0_i32_1 = arith.constant 0 : i32
    return %c0_i32, %c0_i32_0 : i32, i32
  }
}

</mosaic_0001>

<llo_original>
// kernel: tpu_custom_call.1
$region0: #{tpu_custom_call.1}
  #allocation0 [shape = 'u32[]', space=smem, size = 0x4, offset = 0x4, fixed_abs, tag = 'smem constant byte address 0x4 - core index']
  #allocation1 [shape = 'u32[72,128]{1,0:T(1,128)}', space=vmem, size = 0x9000, scoped, tag = 'internal scratch']
  #allocation2 [shape = 'f32[1,8]{1,0:T(1,128)}', space=vmem, size = 0x200, scoped, tag = 'scratch operand']
  #allocation3 [shape = 'f32[16,8]{1,0:T(8,128)}', space=vmem, size = 0x2000, scoped, tag = 'scratch operand']
  %s0 = inlined_call_operand.vmem [shape: s32[1,256], index: 0, kind: input, shape index: {}]
  %s1 = inlined_call_operand.vmem [shape: bf16[256,32], index: 1, kind: input, shape index: {}]
  %s2 = inlined_call_operand.vmem [shape: bf16[256,32], index: 2, kind: input, shape index: {}]
  %s3 = inlined_call_operand.vmem [shape: bf16[256,32], index: 3, kind: input, shape index: {}]
  %s4 = inlined_call_operand.vmem [shape: bf16[32,32], index: 4, kind: input, shape index: {}]
  %s5 = inlined_call_operand.vmem [shape: bf16[32,32], index: 5, kind: input, shape index: {}]
  %s6 = inlined_call_operand.vmem [shape: bf16[32,32], index: 6, kind: input, shape index: {}]
  %s7 = inlined_call_operand.vmem [shape: f32[1,32], index: 7, kind: input, shape index: {}]
  %s8 = inlined_call_operand.vmem [shape: f32[1,32], index: 8, kind: input, shape index: {}]
  %s9 = inlined_call_operand.vmem [shape: bf16[32,32], index: 9, kind: input, shape index: {}]
  %s10 = inlined_call_operand.vmem [shape: f32[1,32], index: 10, kind: input, shape index: {}]
  %s11 = inlined_call_operand.vmem [shape: f32[32,8], index: 11, kind: input, shape index: {}]
  %s12 = inlined_call_operand.hbm [shape: f32[16,32], index: 12, kind: output, shape index: {}]
  %s13 = sld [smem:[#allocation0]]
  $region89: #{tpu_custom_call.1} parent=0
    _
  %s15 = ssub.s32 1, %s13
  %s16 = scalar_select 0, %s15, %s13
  $region1: #{tpu_custom_call.1} parent=0
    #allocation4 [shape = 'u8[8192]{0}', space=vmem, size = 0x2000, scoped, tag = 'output window, operand 0, single buffered']
    #allocation5 [shape = 's32[2]{0}', space=sflag, size = 0x8, scoped, tag = 'scoped memory for tpu_custom_call.1']
    %17 = vsyncpa [#allocation5], 0
    loop: start=0, step=1, limit=4
    $region2: #{tpu_custom_call.1} parent=1 // loop_pre_header
      _
    $region3: #{tpu_custom_call.1} parent=1 // loop_header
      %s19 = sphi 0, %s23
      %p20 = scmp.ge.s32.totalorder %s19, 4
      %s29 = sphi 0, %s31
      %s32 = sphi 0, %s29
      %s33 = sphi 0, %s32
      %s49 = sphi 0, %s33
      %s55 = sphi 0, %s57
      %s58 = sphi 0, %s55
      %s59 = sphi 0, %s58
      %s75 = sphi 0, %s59
      %s81 = sphi 0, %s83
      %s84 = sphi 0, %s81
      %s85 = sphi 0, %s84
      %s101 = sphi 0, %s85
      %s107 = sphi 0, %s109
      %s110 = sphi 0, %s107
      %s111 = sphi 0, %s110
      %s127 = sphi 0, %s111
      %s131 = sphi 0, %s131
      %s133 = sphi 0, %s131
      %s134 = sphi 0, %s133
      %s148 = sphi 0, %s134
      %s152 = sphi 0, %s152
      %s154 = sphi 0, %s152
      %s155 = sphi 0, %s154
      %s169 = sphi 0, %s155
      %s173 = sphi 0, %s173
      %s175 = sphi 0, %s173
      %s176 = sphi 0, %s175
      %s190 = sphi 0, %s176
      %s194 = sphi 0, %s194
      %s196 = sphi 0, %s194
      %s197 = sphi 0, %s196
      %s211 = sphi 0, %s197
      %s215 = sphi 0, %s215
      %s217 = sphi 0, %s215
      %s218 = sphi 0, %s217
      %s232 = sphi 0, %s218
      %s236 = sphi 0, %s236
      %s238 = sphi 0, %s236
      %s239 = sphi 0, %s238
      %s253 = sphi 0, %s239
      %s257 = sphi 0, %s257
      %s259 = sphi 0, %s257
      %s260 = sphi 0, %s259
      %s274 = sphi 0, %s260
      %s278 = sphi 0, %s278
      %s280 = sphi 0, %s278
      %s281 = sphi 0, %s280
      %s295 = sphi 0, %s281
      %s299 = sphi 0, %s299
      %s301 = sphi 0, %s299
      %s302 = sphi 0, %s301
      %s316 = sphi 0, %s302
    $region4: #{tpu_custom_call.1} parent=1 // loop_header_branch
      %22 = sbr.rel (%p20) target = $region8
    $region5: #{tpu_custom_call.1} parent=1 // loop_body
      %s24 = ssub.s32 %s19, 1
      %s25 = ssub.s32 %s19, 2
      %s26 = sadd.s32 %s19, 1
      %s27 = ssub.s32 %s19, %s26
      %p28 = scmp.eq.s32.totalorder %s27, 0
      %s30 = sadd.s32 %s29, 1
      %s31 = scalar_select %p28, %s29, %s30
      %p34 = pneg %p28
      %p35 = scmp.eq.s32.totalorder %s19, 1
      %p36 = por %p34, %p35
      %p37 = scmp.ne.s32.totalorder %s29, %s32
      %p38 = scmp.eq.s32.totalorder %s19, 0
      %p39 = por %p37, %p38
      %p40 = scmp.ne.s32.totalorder %s29, %s32
      %p41 = scmp.eq.s32.totalorder %s24, 1
      %p42 = por %p40, %p41
      %p43 = scmp.ne.s32.totalorder %s32, %s33
      %p44 = scmp.eq.s32.totalorder %s24, 0
      %p45 = por %p43, %p44
      %p46 = scmp.ne.s32.totalorder %s32, %s33
      %p47 = scmp.eq.s32.totalorder %s25, 1
      %p48 = por %p46, %p47
      %p50 = scmp.ne.s32.totalorder %s33, %s49
      %p51 = scmp.eq.s32.totalorder %s25, 0
      %p52 = por %p50, %p51
      %s53 = ssub.s32 %s19, %s26
      %p54 = scmp.eq.s32.totalorder %s53, 0
      %s56 = sadd.s32 %s55, 1
      %s57 = scalar_select %p54, %s55, %s56
      %p60 = pneg %p54
      %p61 = scmp.eq.s32.totalorder %s19, 1
      %p62 = por %p60, %p61
      %p63 = scmp.ne.s32.totalorder %s55, %s58
      %p64 = scmp.eq.s32.totalorder %s19, 0
      %p65 = por %p63, %p64
      %p66 = scmp.ne.s32.totalorder %s55, %s58
      %p67 = scmp.eq.s32.totalorder %s24, 1
      %p68 = por %p66, %p67
      %p69 = scmp.ne.s32.totalorder %s58, %s59
      %p70 = scmp.eq.s32.totalorder %s24, 0
      %p71 = por %p69, %p70
      %p72 = scmp.ne.s32.totalorder %s58, %s59
      %p73 = scmp.eq.s32.totalorder %s25, 1
      %p74 = por %p72, %p73
      %p76 = scmp.ne.s32.totalorder %s59, %s75
      %p77 = scmp.eq.s32.totalorder %s25, 0
      %p78 = por %p76, %p77
      %s79 = ssub.s32 %s19, %s26
      %p80 = scmp.eq.s32.totalorder %s79, 0
      %s82 = sadd.s32 %s81, 1
      %s83 = scalar_select %p80, %s81, %s82
      %p86 = pneg %p80
      %p87 = scmp.eq.s32.totalorder %s19, 1
      %p88 = por %p86, %p87
      %p89 = scmp.ne.s32.totalorder %s81, %s84
      %p90 = scmp.eq.s32.totalorder %s19, 0
      %p91 = por %p89, %p90
      %p92 = scmp.ne.s32.totalorder %s81, %s84
      %p93 = scmp.eq.s32.totalorder %s24, 1
      %p94 = por %p92, %p93
      %p95 = scmp.ne.s32.totalorder %s84, %s85
      %p96 = scmp.eq.s32.totalorder %s24, 0
      %p97 = por %p95, %p96
      %p98 = scmp.ne.s32.totalorder %s84, %s85
      %p99 = scmp.eq.s32.totalorder %s25, 1
      %p100 = por %p98, %p99
      %p102 = scmp.ne.s32.totalorder %s85, %s101
      %p103 = scmp.eq.s32.totalorder %s25, 0
      %p104 = por %p102, %p103
      %s105 = ssub.s32 %s19, %s26
      %p106 = scmp.eq.s32.totalorder %s105, 0
      %s108 = sadd.s32 %s107, 1
      %s109 = scalar_select %p106, %s107, %s108
      %p112 = pneg %p106
      %p113 = scmp.eq.s32.totalorder %s19, 1
      %p114 = por %p112, %p113
      %p115 = scmp.ne.s32.totalorder %s107, %s110
      %p116 = scmp.eq.s32.totalorder %s19, 0
      %p117 = por %p115, %p116
      %p118 = scmp.ne.s32.totalorder %s107, %s110
      %p119 = scmp.eq.s32.totalorder %s24, 1
      %p120 = por %p118, %p119
      %p121 = scmp.ne.s32.totalorder %s110, %s111
      %p122 = scmp.eq.s32.totalorder %s24, 0
      %p123 = por %p121, %p122
      %p124 = scmp.ne.s32.totalorder %s110, %s111
      %p125 = scmp.eq.s32.totalorder %s25, 1
      %p126 = por %p124, %p125
      %p128 = scmp.ne.s32.totalorder %s111, %s127
      %p129 = scmp.eq.s32.totalorder %s25, 0
      %p130 = por %p128, %p129
      %s132 = sadd.s32 %s131, 1
      %p135 = scmp.eq.s32.totalorder %s19, 1
      %p136 = scmp.ne.s32.totalorder %s131, %s133
      %p137 = scmp.eq.s32.totalorder %s19, 0
      %p138 = por %p136, %p137
      %p139 = scmp.ne.s32.totalorder %s131, %s133
      %p140 = scmp.eq.s32.totalorder %s24, 1
      %p141 = por %p139, %p140
      %p142 = scmp.ne.s32.totalorder %s133, %s134
      %p143 = scmp.eq.s32.totalorder %s24, 0
      %p144 = por %p142, %p143
      %p145 = scmp.ne.s32.totalorder %s133, %s134
      %p146 = scmp.eq.s32.totalorder %s25, 1
      %p147 = por %p145, %p146
      %p149 = scmp.ne.s32.totalorder %s134, %s148
      %p150 = scmp.eq.s32.totalorder %s25, 0
      %p151 = por %p149, %p150
      %s153 = sadd.s32 %s152, 1
      %p156 = scmp.eq.s32.totalorder %s19, 1
      %p157 = scmp.ne.s32.totalorder %s152, %s154
      %p158 = scmp.eq.s32.totalorder %s19, 0
      %p159 = por %p157, %p158
      %p160 = scmp.ne.s32.totalorder %s152, %s154
      %p161 = scmp.eq.s32.totalorder %s24, 1
      %p162 = por %p160, %p161
      %p163 = scmp.ne.s32.totalorder %s154, %s155
      %p164 = scmp.eq.s32.totalorder %s24, 0
      %p165 = por %p163, %p164
      %p166 = scmp.ne.s32.totalorder %s154, %s155
      %p167 = scmp.eq.s32.totalorder %s25, 1
      %p168 = por %p166, %p167
      %p170 = scmp.ne.s32.totalorder %s155, %s169
      %p171 = scmp.eq.s32.totalorder %s25, 0
      %p172 = por %p170, %p171
      %s174 = sadd.s32 %s173, 1
      %p177 = scmp.eq.s32.totalorder %s19, 1
      %p178 = scmp.ne.s32.totalorder %s173, %s175
      %p179 = scmp.eq.s32.totalorder %s19, 0
      %p180 = por %p178, %p179
      %p181 = scmp.ne.s32.totalorder %s173, %s175
      %p182 = scmp.eq.s32.totalorder %s24, 1
      %p183 = por %p181, %p182
      %p184 = scmp.ne.s32.totalorder %s175, %s176
      %p185 = scmp.eq.s32.totalorder %s24, 0
      %p186 = por %p184, %p185
      %p187 = scmp.ne.s32.totalorder %s175, %s176
      %p188 = scmp.eq.s32.totalorder %s25, 1
      %p189 = por %p187, %p188
      %p191 = scmp.ne.s32.totalorder %s176, %s190
      %p192 = scmp.eq.s32.totalorder %s25, 0
      %p193 = por %p191, %p192
      %s195 = sadd.s32 %s194, 1
      %p198 = scmp.eq.s32.totalorder %s19, 1
      %p199 = scmp.ne.s32.totalorder %s194, %s196
      %p200 = scmp.eq.s32.totalorder %s19, 0
      %p201 = por %p199, %p200
      %p202 = scmp.ne.s32.totalorder %s194, %s196
      %p203 = scmp.eq.s32.totalorder %s24, 1
      %p204 = por %p202, %p203
      %p205 = scmp.ne.s32.totalorder %s196, %s197
      %p206 = scmp.eq.s32.totalorder %s24, 0
      %p207 = por %p205, %p206
      %p208 = scmp.ne.s32.totalorder %s196, %s197
      %p209 = scmp.eq.s32.totalorder %s25, 1
      %p210 = por %p208, %p209
      %p212 = scmp.ne.s32.totalorder %s197, %s211
      %p213 = scmp.eq.s32.totalorder %s25, 0
      %p214 = por %p212, %p213
      %s216 = sadd.s32 %s215, 1
      %p219 = scmp.eq.s32.totalorder %s19, 1
      %p220 = scmp.ne.s32.totalorder %s215, %s217
      %p221 = scmp.eq.s32.totalorder %s19, 0
      %p222 = por %p220, %p221
      %p223 = scmp.ne.s32.totalorder %s215, %s217
      %p224 = scmp.eq.s32.totalorder %s24, 1
      %p225 = por %p223, %p224
      %p226 = scmp.ne.s32.totalorder %s217, %s218
      %p227 = scmp.eq.s32.totalorder %s24, 0
      %p228 = por %p226, %p227
      %p229 = scmp.ne.s32.totalorder %s217, %s218
      %p230 = scmp.eq.s32.totalorder %s25, 1
      %p231 = por %p229, %p230
      %p233 = scmp.ne.s32.totalorder %s218, %s232
      %p234 = scmp.eq.s32.totalorder %s25, 0
      %p235 = por %p233, %p234
      %s237 = sadd.s32 %s236, 1
      %p240 = scmp.eq.s32.totalorder %s19, 1
      %p241 = scmp.ne.s32.totalorder %s236, %s238
      %p242 = scmp.eq.s32.totalorder %s19, 0
      %p243 = por %p241, %p242
      %p244 = scmp.ne.s32.totalorder %s236, %s238
      %p245 = scmp.eq.s32.totalorder %s24, 1
      %p246 = por %p244, %p245
      %p247 = scmp.ne.s32.totalorder %s238, %s239
      %p248 = scmp.eq.s32.totalorder %s24, 0
      %p249 = por %p247, %p248
      %p250 = scmp.ne.s32.totalorder %s238, %s239
      %p251 = scmp.eq.s32.totalorder %s25, 1
      %p252 = por %p250, %p251
      %p254 = scmp.ne.s32.totalorder %s239, %s253
      %p255 = scmp.eq.s32.totalorder %s25, 0
      %p256 = por %p254, %p255
      %s258 = sadd.s32 %s257, 1
      %p261 = scmp.eq.s32.totalorder %s19, 1
      %p262 = scmp.ne.s32.totalorder %s257, %s259
      %p263 = scmp.eq.s32.totalorder %s19, 0
      %p264 = por %p262, %p263
      %p265 = scmp.ne.s32.totalorder %s257, %s259
      %p266 = scmp.eq.s32.totalorder %s24, 1
      %p267 = por %p265, %p266
      %p268 = scmp.ne.s32.totalorder %s259, %s260
      %p269 = scmp.eq.s32.totalorder %s24, 0
      %p270 = por %p268, %p269
      %p271 = scmp.ne.s32.totalorder %s259, %s260
      %p272 = scmp.eq.s32.totalorder %s25, 1
      %p273 = por %p271, %p272
      %p275 = scmp.ne.s32.totalorder %s260, %s274
      %p276 = scmp.eq.s32.totalorder %s25, 0
      %p277 = por %p275, %p276
      %s279 = sadd.s32 %s278, 1
      %p282 = scmp.eq.s32.totalorder %s19, 1
      %p283 = scmp.ne.s32.totalorder %s278, %s280
      %p284 = scmp.eq.s32.totalorder %s19, 0
      %p285 = por %p283, %p284
      %p286 = scmp.ne.s32.totalorder %s278, %s280
      %p287 = scmp.eq.s32.totalorder %s24, 1
      %p288 = por %p286, %p287
      %p289 = scmp.ne.s32.totalorder %s280, %s281
      %p290 = scmp.eq.s32.totalorder %s24, 0
      %p291 = por %p289, %p290
      %p292 = scmp.ne.s32.totalorder %s280, %s281
      %p293 = scmp.eq.s32.totalorder %s25, 1
      %p294 = por %p292, %p293
      %p296 = scmp.ne.s32.totalorder %s281, %s295
      %p297 = scmp.eq.s32.totalorder %s25, 0
      %p298 = por %p296, %p297
      %s300 = sadd.s32 %s299, 1
      %p303 = scmp.eq.s32.totalorder %s19, 1
      %p304 = scmp.ne.s32.totalorder %s299, %s301
      %p305 = scmp.eq.s32.totalorder %s19, 0
      %p306 = por %p304, %p305
      %p307 = scmp.ne.s32.totalorder %s299, %s301
      %p308 = scmp.eq.s32.totalorder %s24, 1
      %p309 = por %p307, %p308
      %p310 = scmp.ne.s32.totalorder %s301, %s302
      %p311 = scmp.eq.s32.totalorder %s24, 0
      %p312 = por %p310, %p311
      %p313 = scmp.ne.s32.totalorder %s301, %s302
      %p314 = scmp.eq.s32.totalorder %s25, 1
      %p315 = por %p313, %p314
      %p317 = scmp.ne.s32.totalorder %s302, %s316
      %p318 = scmp.eq.s32.totalorder %s25, 0
      %p319 = por %p317, %p318
      %p320 = scmp.le.s32.totalorder 1, %s19
      %p321 = scmp.lt.s32.totalorder %s19, 3
      %p322 = pnand %p320, %p321
      %p323 = pneg %p322
      // Predicated region
      $region9: #{tpu_custom_call.1} parent=5 // pred_check
        _
      $region10: #{tpu_custom_call.1} parent=5 // pred_check_branch
        %325 = sbr.rel (%p322) target = $region12
      $region11: #{tpu_custom_call.1} parent=5 // pred_region
        %s326 = ssub.s32 %s19, 1
        // Predicated region
        $region13: #{tpu_custom_call.1} parent=11 // pred_check
          %p327 = pneg %p144
        $region14: #{tpu_custom_call.1} parent=11 // pred_check_branch
          %329 = sbr.rel (%p327) target = $region16
        $region15: #{tpu_custom_call.1} parent=11 // pred_region
          _
        $region16: #{tpu_custom_call.1} parent=11 // pred_fallthru
          _
        // Predicated region
        $region17: #{tpu_custom_call.1} parent=11 // pred_check
          %p330 = pneg %p165
        $region18: #{tpu_custom_call.1} parent=11 // pred_check_branch
          %332 = sbr.rel (%p330) target = $region20
        $region19: #{tpu_custom_call.1} parent=11 // pred_region
          _
        $region20: #{tpu_custom_call.1} parent=11 // pred_fallthru
          _
        // Predicated region
        $region21: #{tpu_custom_call.1} parent=11 // pred_check
          %p333 = pneg %p186
        $region22: #{tpu_custom_call.1} parent=11 // pred_check_branch
          %335 = sbr.rel (%p333) target = $region24
        $region23: #{tpu_custom_call.1} parent=11 // pred_region
          _
        $region24: #{tpu_custom_call.1} parent=11 // pred_fallthru
          _
        // Predicated region
        $region25: #{tpu_custom_call.1} parent=11 // pred_check
          %p336 = pneg %p207
        $region26: #{tpu_custom_call.1} parent=11 // pred_check_branch
          %338 = sbr.rel (%p336) target = $region28
        $region27: #{tpu_custom_call.1} parent=11 // pred_region
          _
        $region28: #{tpu_custom_call.1} parent=11 // pred_fallthru
          _
        // Predicated region
        $region29: #{tpu_custom_call.1} parent=11 // pred_check
          %p339 = pneg %p228
        $region30: #{tpu_custom_call.1} parent=11 // pred_check_branch
          %341 = sbr.rel (%p339) target = $region32
        $region31: #{tpu_custom_call.1} parent=11 // pred_region
          _
        $region32: #{tpu_custom_call.1} parent=11 // pred_fallthru
          _
        // Predicated region
        $region33: #{tpu_custom_call.1} parent=11 // pred_check
          %p342 = pneg %p249
        $region34: #{tpu_custom_call.1} parent=11 // pred_check_branch
          %344 = sbr.rel (%p342) target = $region36
        $region35: #{tpu_custom_call.1} parent=11 // pred_region
          _
        $region36: #{tpu_custom_call.1} parent=11 // pred_fallthru
          _
        // Predicated region
        $region37: #{tpu_custom_call.1} parent=11 // pred_check
          %p345 = pneg %p270
        $region38: #{tpu_custom_call.1} parent=11 // pred_check_branch
          %347 = sbr.rel (%p345) target = $region40
        $region39: #{tpu_custom_call.1} parent=11 // pred_region
          _
        $region40: #{tpu_custom_call.1} parent=11 // pred_fallthru
          _
        // Predicated region
        $region41: #{tpu_custom_call.1} parent=11 // pred_check
          %p348 = pneg %p291
        $region42: #{tpu_custom_call.1} parent=11 // pred_check_branch
          %350 = sbr.rel (%p348) target = $region44
        $region43: #{tpu_custom_call.1} parent=11 // pred_region
          _
        $region44: #{tpu_custom_call.1} parent=11 // pred_fallthru
          _
      $region12: #{tpu_custom_call.1} parent=5 // pred_fallthru
        _
      %p351 = scmp.lt.s32.totalorder %s19, 2
      // Predicated region
      $region45: #{tpu_custom_call.1} parent=5 // pred_check
        %p352 = pneg %p351
      $region46: #{tpu_custom_call.1} parent=5 // pred_check_branch
        %354 = sbr.rel (%p352) target = $region48
      $region47: #{tpu_custom_call.1} parent=5 // pred_region
        // Predicated region
        $region49: #{tpu_custom_call.1} parent=47 // pred_check
          %p355 = pneg %p39
        $region50: #{tpu_custom_call.1} parent=47 // pred_check_branch
          %357 = sbr.rel (%p355) target = $region52
        $region51: #{tpu_custom_call.1} parent=47 // pred_region
          %p358 = scmp.lt.s32.totalorder %s19, 1
          %s359 = scalar_select %p358, %s19, 1
          %s360 = scalar_lea.vmem %s0, %s359
        $region52: #{tpu_custom_call.1} parent=47 // pred_fallthru
          _
        // Predicated region
        $region53: #{tpu_custom_call.1} parent=47 // pred_check
          %p361 = pneg %p65
        $region54: #{tpu_custom_call.1} parent=47 // pred_check_branch
          %363 = sbr.rel (%p361) target = $region56
        $region55: #{tpu_custom_call.1} parent=47 // pred_region
          %s364 = smul.u32 16, %s19
          %p365 = scmp.lt.s32.totalorder %s364, 31
          %s366 = scalar_select %p365, %s364, 31
          %s367 = smul.addr %s366, 4
          %s368 = scalar_lea.vmem %s1, %s367
          %s369 = smul.u32 16, %s19
        $region56: #{tpu_custom_call.1} parent=47 // pred_fallthru
          _
        // Predicated region
        $region57: #{tpu_custom_call.1} parent=47 // pred_check
          %p370 = pneg %p91
        $region58: #{tpu_custom_call.1} parent=47 // pred_check_branch
          %372 = sbr.rel (%p370) target = $region60
        $region59: #{tpu_custom_call.1} parent=47 // pred_region
          %s373 = smul.u32 16, %s19
          %p374 = scmp.lt.s32.totalorder %s373, 31
          %s375 = scalar_select %p374, %s373, 31
          %s376 = smul.addr %s375, 4
          %s377 = scalar_lea.vmem %s2, %s376
          %s378 = smul.u32 16, %s19
        $region60: #{tpu_custom_call.1} parent=47 // pred_fallthru
          _
        // Predicated region
        $region61: #{tpu_custom_call.1} parent=47 // pred_check
          %p379 = pneg %p117
        $region62: #{tpu_custom_call.1} parent=47 // pred_check_branch
          %381 = sbr.rel (%p379) target = $region64
        $region63: #{tpu_custom_call.1} parent=47 // pred_region
          %s382 = smul.u32 16, %s19
          %p383 = scmp.lt.s32.totalorder %s382, 31
          %s384 = scalar_select %p383, %s382, 31
          %s385 = smul.addr %s384, 4
          %s386 = scalar_lea.vmem %s3, %s385
          %s387 = smul.u32 16, %s19
        $region64: #{tpu_custom_call.1} parent=47 // pred_fallthru
          _
      $region48: #{tpu_custom_call.1} parent=5 // pred_fallthru
        _
      %p388 = scmp.le.s32.totalorder 1, %s19
      %p389 = scmp.lt.s32.totalorder %s19, 3
      %p390 = pnand %p388, %p389
      %p391 = pneg %p390
      // Predicated region
      $region65: #{tpu_custom_call.1} parent=5 // pred_check
        _
      $region66: #{tpu_custom_call.1} parent=5 // pred_check_branch
        %393 = sbr.rel (%p390) target = $region68
      $region67: #{tpu_custom_call.1} parent=5 // pred_region
        %s394 = ssub.s32 %s19, 1
        %p395 = scmp.lt.s32.totalorder %s24, 1
        %s396 = scalar_select %p395, %s24, 1
        %s397 = scalar_lea.vmem %s0, %s396
        %p398 = pneg %p45
        %p399 = pneg %p42
        %s400 = smul.u32 16, %s24
        %p401 = scmp.lt.s32.totalorder %s400, 31
        %s402 = scalar_select %p401, %s400, 31
        %s403 = smul.addr %s402, 4
        %s404 = scalar_lea.vmem %s1, %s403
        %p405 = pneg %p71
        %p406 = pneg %p68
        %s407 = smul.u32 16, %s24
        %p408 = scmp.lt.s32.totalorder %s407, 31
        %s409 = scalar_select %p408, %s407, 31
        %s410 = smul.addr %s409, 4
        %s411 = scalar_lea.vmem %s2, %s410
        %p412 = pneg %p97
        %p413 = pneg %p94
        %s414 = smul.u32 16, %s24
        %p415 = scmp.lt.s32.totalorder %s414, 31
        %s416 = scalar_select %p415, %s414, 31
        %s417 = smul.addr %s416, 4
        %s418 = scalar_lea.vmem %s3, %s417
        %p419 = pneg %p123
        %p420 = pneg %p120
        %p421 = pneg %p144
        %p422 = pneg %p141
        %p423 = pneg %p165
        %p424 = pneg %p162
        %p425 = pneg %p186
        %p426 = pneg %p183
        %p427 = pneg %p207
        %p428 = pneg %p204
        %p429 = pneg %p228
        %p430 = pneg %p225
        %p431 = pneg %p249
        %p432 = pneg %p246
        %p433 = pneg %p270
        %p434 = pneg %p267
        %p435 = pneg %p291
        %p436 = pneg %p288
        %p437 = pneg %p312
        %p438 = pneg %p309
        %p439 = scmp.lt.s32.totalorder %s24, 1
        %s440 = scalar_select %p439, %s24, 1
        %s441 = scalar_lea.vmem %s0, %s440
        %s442 = smul.u32 16, %s24
        %p443 = scmp.lt.s32.totalorder %s442, 31
        %s444 = scalar_select %p443, %s442, 31
        %s445 = smul.addr %s444, 4
        %s446 = scalar_lea.vmem %s1, %s445
        %s447 = smul.u32 16, %s24
        %s448 = smul.u32 16, %s24
        %p449 = scmp.lt.s32.totalorder %s448, 31
        %s450 = scalar_select %p449, %s448, 31
        %s451 = smul.addr %s450, 4
        %s452 = scalar_lea.vmem %s2, %s451
        %s453 = smul.u32 16, %s24
        %s454 = smul.u32 16, %s24
        %p455 = scmp.lt.s32.totalorder %s454, 31
        %s456 = scalar_select %p455, %s454, 31
        %s457 = smul.addr %s456, 4
        %s458 = scalar_lea.vmem %s3, %s457
        %s459 = smul.u32 16, %s24
        %p461 = scmp.eq.s32.totalorder %s24, 0
        // Predicated region
        $region69: #{tpu_custom_call.1} parent=67 // pred_check
          %p462 = pneg %p461
        $region70: #{tpu_custom_call.1} parent=67 // pred_check_branch
          %464 = sbr.rel (%p462) target = $region72
        $region71: #{tpu_custom_call.1} parent=67 // pred_region
          %vm465 = vcmask 57344
          %466 = vst.msk [vmem:[#allocation2] sm:$0x1] %vm465, -1e+30
          %vm467 = vcmask 64512
          %468 = vst.msk [vmem:[#allocation3] sm:$0xff] %vm467, 0.0
          %469 = vst.msk [vmem:[#allocation3 + $0x8] sm:$0xff] %vm467, 0.0
          %vm470 = vcmask 261120
          %471 = vst.msk [vmem:[#allocation4] sm:$0xff] %vm470, 0.0
          %472 = vst.msk [vmem:[#allocation4 + $0x8] sm:$0xff] %vm470, 0.0
        $region72: #{tpu_custom_call.1} parent=67 // pred_fallthru
          _
        %v473 = vld [vmem:[%s11] sm:$0xff]
        %v474 = vld [vmem:[%s11 + $0x8] sm:$0xff]
        %v475 = vld [vmem:[%s11 + $0x10] sm:$0xff]
        %v476 = vld [vmem:[%s11 + $0x18] sm:$0xff]
        %v477 = vld [vmem:[%s446] sm:$0xf]
        %v478 = vld [vmem:[%s446 + $0x4] sm:$0xf]
        %v479 = vld [vmem:[%s446 + $0x8] sm:$0xf]
        %v480 = vld [vmem:[%s446 + $0xc] sm:$0xf]
        %v481 = vld [vmem:[%s446 + $0x10] sm:$0xf]
        %v482 = vld [vmem:[%s446 + $0x14] sm:$0xf]
        %v483 = vld [vmem:[%s446 + $0x18] sm:$0xf]
        %v484 = vld [vmem:[%s446 + $0x1c] sm:$0xf]
        %v485 = vld [vmem:[%s446 + $0x20] sm:$0xf]
        %v486 = vld [vmem:[%s446 + $0x24] sm:$0xf]
        %v487 = vld [vmem:[%s446 + $0x28] sm:$0xf]
        %v488 = vld [vmem:[%s446 + $0x2c] sm:$0xf]
        %v489 = vld [vmem:[%s446 + $0x30] sm:$0xf]
        %v490 = vld [vmem:[%s446 + $0x34] sm:$0xf]
        %v491 = vld [vmem:[%s446 + $0x38] sm:$0xf]
        %v492 = vld [vmem:[%s446 + $0x3c] sm:$0xf]
        %v493 = vld [vmem:[%s4] sm:$0xf]
        %v494 = vld [vmem:[%s4 + $0x4] sm:$0xf]
        %v495 = vld [vmem:[%s4 + $0x8] sm:$0xf]
        %v496 = vld [vmem:[%s4 + $0xc] sm:$0xf]
        %v497 = vld [vmem:[%s452] sm:$0xf]
        %v498 = vld [vmem:[%s452 + $0x4] sm:$0xf]
        %v499 = vld [vmem:[%s452 + $0x8] sm:$0xf]
        %v500 = vld [vmem:[%s452 + $0xc] sm:$0xf]
        %v501 = vld [vmem:[%s452 + $0x10] sm:$0xf]
        %v502 = vld [vmem:[%s452 + $0x14] sm:$0xf]
        %v503 = vld [vmem:[%s452 + $0x18] sm:$0xf]
        %v504 = vld [vmem:[%s452 + $0x1c] sm:$0xf]
        %v505 = vld [vmem:[%s452 + $0x20] sm:$0xf]
        %v506 = vld [vmem:[%s452 + $0x24] sm:$0xf]
        %v507 = vld [vmem:[%s452 + $0x28] sm:$0xf]
        %v508 = vld [vmem:[%s452 + $0x2c] sm:$0xf]
        %v509 = vld [vmem:[%s452 + $0x30] sm:$0xf]
        %v510 = vld [vmem:[%s452 + $0x34] sm:$0xf]
        %v511 = vld [vmem:[%s452 + $0x38] sm:$0xf]
        %v512 = vld [vmem:[%s452 + $0x3c] sm:$0xf]
        %v513 = vld [vmem:[%s5] sm:$0xf]
        %v514 = vld [vmem:[%s5 + $0x4] sm:$0xf]
        %v515 = vld [vmem:[%s5 + $0x8] sm:$0xf]
        %v516 = vld [vmem:[%s5 + $0xc] sm:$0xf]
        %v533 = vunpack.c.l.b16 %v497
        %v534 = vunpack.c.l.b16 %v498
        %v535 = vunpack.c.l.b16 %v499
        %v536 = vunpack.c.l.b16 %v500
        %v537 = vunpack.c.l.b16 %v501
        %v538 = vunpack.c.l.b16 %v502
        %v539 = vunpack.c.l.b16 %v503
        %v540 = vunpack.c.l.b16 %v504
        %v541 = vunpack.c.l.b16 %v505
        %v542 = vunpack.c.l.b16 %v506
        %v543 = vunpack.c.l.b16 %v507
        %v544 = vunpack.c.l.b16 %v508
        %v545 = vunpack.c.l.b16 %v509
        %v546 = vunpack.c.l.b16 %v510
        %v547 = vunpack.c.l.b16 %v511
        %v548 = vunpack.c.l.b16 %v512
        %v549 = vpack.c.b16 %v534, %v533
        %v550 = vpack.c.b16 %v536, %v535
        %v551 = vpack.c.b16 %v538, %v537
        %v552 = vpack.c.b16 %v540, %v539
        %v553 = vpack.c.b16 %v542, %v541
        %v554 = vpack.c.b16 %v544, %v543
        %v555 = vpack.c.b16 %v546, %v545
        %v556 = vpack.c.b16 %v548, %v547
        %v561 = vunpack.c.l.b16 %v513
        %v562 = vunpack.c.l.b16 %v514
        %v563 = vunpack.c.l.b16 %v515
        %v564 = vunpack.c.l.b16 %v516
        %v565 = vpack.c.b16 %v562, %v561
        %v566 = vpack.c.b16 %v564, %v563
        %vm569 = vcmask 261120
        %v571 = vsel %vm569, %v549, 0
        %v574 = vsel %vm569, %v550, 0
        %v577 = vsel %vm569, %v551, 0
        %v580 = vsel %vm569, %v552, 0
        %v583 = vsel %vm569, %v553, 0
        %v586 = vsel %vm569, %v554, 0
        %v589 = vsel %vm569, %v555, 0
        %v592 = vsel %vm569, %v556, 0
        %594 = vmatpush.bf16.msra.mxu0 0
        %595 = vmatpush.bf16.msra.mxu0 0
        %596 = vmatpush.bf16.msra.mxu0 0
        %597 = vmatpush.bf16.msra.mxu0 0
        %598 = vmatpush.bf16.msra.mxu0 0
        %599 = vmatpush.bf16.msra.mxu0 0
        %600 = vmatpush.bf16.msra.mxu0 %v566
        %601 = vmatpush.bf16.msra.mxu0 %v565
        %602 = vmatmul.bf16.gmra.mxu0 %v571
        %v603 = vpop.f32.mrf.mxu0
        %v604 = vadd.f32 0.0, %v603
        %v605 = vpop.f32.mrf.mxu0
        %v606 = vadd.f32 0.0, %v605
        %607 = vmatmul.bf16.gmra.mxu0 %v574
        %v608 = vpop.f32.mrf.mxu0
        %v609 = vadd.f32 0.0, %v608
        %v610 = vpop.f32.mrf.mxu0
        %v611 = vadd.f32 0.0, %v610
        %612 = vmatmul.bf16.gmra.mxu0 %v577
        %v613 = vpop.f32.mrf.mxu0
        %v614 = vadd.f32 0.0, %v613
        %v615 = vpop.f32.mrf.mxu0
        %v616 = vadd.f32 0.0, %v615
        %617 = vmatmul.bf16.gmra.mxu0 %v580
        %v618 = vpop.f32.mrf.mxu0
        %v619 = vadd.f32 0.0, %v618
        %v620 = vpop.f32.mrf.mxu0
        %v621 = vadd.f32 0.0, %v620
        %622 = vmatmul.bf16.gmra.mxu0 %v583
        %v623 = vpop.f32.mrf.mxu0
        %v624 = vadd.f32 0.0, %v623
        %v625 = vpop.f32.mrf.mxu0
        %v626 = vadd.f32 0.0, %v625
        %627 = vmatmul.bf16.gmra.mxu0 %v586
        %v628 = vpop.f32.mrf.mxu0
        %v629 = vadd.f32 0.0, %v628
        %v630 = vpop.f32.mrf.mxu0
        %v631 = vadd.f32 0.0, %v630
        %632 = vmatmul.bf16.gmra.mxu0 %v589
        %v633 = vpop.f32.mrf.mxu0
        %v634 = vadd.f32 0.0, %v633
        %v635 = vpop.f32.mrf.mxu0
        %v636 = vadd.f32 0.0, %v635
        %637 = vmatmul.bf16.gmra.mxu0 %v592
        %v638 = vpop.f32.mrf.mxu0
        %v639 = vadd.f32 0.0, %v638
        %v640 = vpop.f32.mrf.mxu0
        %v641 = vadd.f32 0.0, %v640
        %642 = vdwg.mxu0
        %v659 = vunpack.c.l.b16 %v477
        %v660 = vunpack.c.l.b16 %v478
        %v661 = vunpack.c.l.b16 %v479
        %v662 = vunpack.c.l.b16 %v480
        %v663 = vunpack.c.l.b16 %v481
        %v664 = vunpack.c.l.b16 %v482
        %v665 = vunpack.c.l.b16 %v483
        %v666 = vunpack.c.l.b16 %v484
        %v667 = vunpack.c.l.b16 %v485
        %v668 = vunpack.c.l.b16 %v486
        %v669 = vunpack.c.l.b16 %v487
        %v670 = vunpack.c.l.b16 %v488
        %v671 = vunpack.c.l.b16 %v489
        %v672 = vunpack.c.l.b16 %v490
        %v673 = vunpack.c.l.b16 %v491
        %v674 = vunpack.c.l.b16 %v492
        %v675 = vpack.c.b16 %v660, %v659
        %v676 = vpack.c.b16 %v662, %v661
        %v677 = vpack.c.b16 %v664, %v663
        %v678 = vpack.c.b16 %v666, %v665
        %v679 = vpack.c.b16 %v668, %v667
        %v680 = vpack.c.b16 %v670, %v669
        %v681 = vpack.c.b16 %v672, %v671
        %v682 = vpack.c.b16 %v674, %v673
        %v687 = vunpack.c.l.b16 %v493
        %v688 = vunpack.c.l.b16 %v494
        %v689 = vunpack.c.l.b16 %v495
        %v690 = vunpack.c.l.b16 %v496
        %v691 = vpack.c.b16 %v688, %v687
        %v692 = vpack.c.b16 %v690, %v689
        %v696 = vsel %vm569, %v675, 0
        %v699 = vsel %vm569, %v676, 0
        %v702 = vsel %vm569, %v677, 0
        %v705 = vsel %vm569, %v678, 0
        %v708 = vsel %vm569, %v679, 0
        %v711 = vsel %vm569, %v680, 0
        %v714 = vsel %vm569, %v681, 0
        %v717 = vsel %vm569, %v682, 0
        %719 = vmatpush.bf16.msra.mxu0 0
        %720 = vmatpush.bf16.msra.mxu0 0
        %721 = vmatpush.bf16.msra.mxu0 0
        %722 = vmatpush.bf16.msra.mxu0 0
        %723 = vmatpush.bf16.msra.mxu0 0
        %724 = vmatpush.bf16.msra.mxu0 0
        %725 = vmatpush.bf16.msra.mxu0 %v692
        %726 = vmatpush.bf16.msra.mxu0 %v691
        %727 = vmatmul.bf16.gmra.mxu0 %v696
        %v728 = vpop.f32.mrf.mxu0
        %v729 = vadd.f32 %v604, %v728
        %v730 = vpop.f32.mrf.mxu0
        %v731 = vadd.f32 %v606, %v730
        %732 = vmatmul.bf16.gmra.mxu0 %v699
        %v733 = vpop.f32.mrf.mxu0
        %v734 = vadd.f32 %v609, %v733
        %v735 = vpop.f32.mrf.mxu0
        %v736 = vadd.f32 %v611, %v735
        %737 = vmatmul.bf16.gmra.mxu0 %v702
        %v738 = vpop.f32.mrf.mxu0
        %v739 = vadd.f32 %v614, %v738
        %v740 = vpop.f32.mrf.mxu0
        %v741 = vadd.f32 %v616, %v740
        %742 = vmatmul.bf16.gmra.mxu0 %v705
        %v743 = vpop.f32.mrf.mxu0
        %v744 = vadd.f32 %v619, %v743
        %v745 = vpop.f32.mrf.mxu0
        %v746 = vadd.f32 %v621, %v745
        %747 = vmatmul.bf16.gmra.mxu0 %v708
        %v748 = vpop.f32.mrf.mxu0
        %v749 = vadd.f32 %v624, %v748
        %v750 = vpop.f32.mrf.mxu0
        %v751 = vadd.f32 %v626, %v750
        %752 = vmatmul.bf16.gmra.mxu0 %v711
        %v753 = vpop.f32.mrf.mxu0
        %v754 = vadd.f32 %v629, %v753
        %v755 = vpop.f32.mrf.mxu0
        %v756 = vadd.f32 %v631, %v755
        %757 = vmatmul.bf16.gmra.mxu0 %v714
        %v758 = vpop.f32.mrf.mxu0
        %v759 = vadd.f32 %v634, %v758
        %v760 = vpop.f32.mrf.mxu0
        %v761 = vadd.f32 %v636, %v760
        %762 = vmatmul.bf16.gmra.mxu0 %v717
        %v763 = vpop.f32.mrf.mxu0
        %v764 = vadd.f32 %v639, %v763
        %v765 = vpop.f32.mrf.mxu0
        %v766 = vadd.f32 %v641, %v765
        %767 = vdwg.mxu0
        %v768 = vld [vmem:[%s458] sm:$0xf]
        %v769 = vld [vmem:[%s458 + $0x4] sm:$0xf]
        %v770 = vld [vmem:[%s458 + $0x8] sm:$0xf]
        %v771 = vld [vmem:[%s458 + $0xc] sm:$0xf]
        %v772 = vld [vmem:[%s458 + $0x10] sm:$0xf]
        %v773 = vld [vmem:[%s458 + $0x14] sm:$0xf]
        %v774 = vld [vmem:[%s458 + $0x18] sm:$0xf]
        %v775 = vld [vmem:[%s458 + $0x1c] sm:$0xf]
        %v776 = vld [vmem:[%s458 + $0x20] sm:$0xf]
        %v777 = vld [vmem:[%s458 + $0x24] sm:$0xf]
        %v778 = vld [vmem:[%s458 + $0x28] sm:$0xf]
        %v779 = vld [vmem:[%s458 + $0x2c] sm:$0xf]
        %v780 = vld [vmem:[%s458 + $0x30] sm:$0xf]
        %v781 = vld [vmem:[%s458 + $0x34] sm:$0xf]
        %v782 = vld [vmem:[%s458 + $0x38] sm:$0xf]
        %v783 = vld [vmem:[%s458 + $0x3c] sm:$0xf]
        %v784 = vld [vmem:[%s6] sm:$0xf]
        %v785 = vld [vmem:[%s6 + $0x4] sm:$0xf]
        %v786 = vld [vmem:[%s6 + $0x8] sm:$0xf]
        %v787 = vld [vmem:[%s6 + $0xc] sm:$0xf]
        %v804 = vunpack.c.l.b16 %v768
        %v805 = vunpack.c.l.b16 %v769
        %v806 = vunpack.c.l.b16 %v770
        %v807 = vunpack.c.l.b16 %v771
        %v808 = vunpack.c.l.b16 %v772
        %v809 = vunpack.c.l.b16 %v773
        %v810 = vunpack.c.l.b16 %v774
        %v811 = vunpack.c.l.b16 %v775
        %v812 = vunpack.c.l.b16 %v776
        %v813 = vunpack.c.l.b16 %v777
        %v814 = vunpack.c.l.b16 %v778
        %v815 = vunpack.c.l.b16 %v779
        %v816 = vunpack.c.l.b16 %v780
        %v817 = vunpack.c.l.b16 %v781
        %v818 = vunpack.c.l.b16 %v782
        %v819 = vunpack.c.l.b16 %v783
        %v820 = vpack.c.b16 %v805, %v804
        %v821 = vpack.c.b16 %v807, %v806
        %v822 = vpack.c.b16 %v809, %v808
        %v823 = vpack.c.b16 %v811, %v810
        %v824 = vpack.c.b16 %v813, %v812
        %v825 = vpack.c.b16 %v815, %v814
        %v826 = vpack.c.b16 %v817, %v816
        %v827 = vpack.c.b16 %v819, %v818
        %v832 = vunpack.c.l.b16 %v784
        %v833 = vunpack.c.l.b16 %v785
        %v834 = vunpack.c.l.b16 %v786
        %v835 = vunpack.c.l.b16 %v787
        %v836 = vpack.c.b16 %v833, %v832
        %v837 = vpack.c.b16 %v835, %v834
        %v841 = vsel %vm569, %v820, 0
        %v844 = vsel %vm569, %v821, 0
        %v847 = vsel %vm569, %v822, 0
        %v850 = vsel %vm569, %v823, 0
        %v853 = vsel %vm569, %v824, 0
        %v856 = vsel %vm569, %v825, 0
        %v859 = vsel %vm569, %v826, 0
        %v862 = vsel %vm569, %v827, 0
        %864 = vmatpush.bf16.msra.mxu0 0
        %865 = vmatpush.bf16.msra.mxu0 0
        %866 = vmatpush.bf16.msra.mxu0 0
        %867 = vmatpush.bf16.msra.mxu0 0
        %868 = vmatpush.bf16.msra.mxu0 0
        %869 = vmatpush.bf16.msra.mxu0 0
        %870 = vmatpush.bf16.msra.mxu0 %v837
        %871 = vmatpush.bf16.msra.mxu0 %v836
        %872 = vmatmul.bf16.gmra.mxu0 %v841
        %v873 = vpop.f32.mrf.mxu0
        %v874 = vadd.f32 0.0, %v873
        %v875 = vpop.f32.mrf.mxu0
        %v876 = vadd.f32 0.0, %v875
        %877 = vmatmul.bf16.gmra.mxu0 %v844
        %v878 = vpop.f32.mrf.mxu0
        %v879 = vadd.f32 0.0, %v878
        %v880 = vpop.f32.mrf.mxu0
        %v881 = vadd.f32 0.0, %v880
        %882 = vmatmul.bf16.gmra.mxu0 %v847
        %v883 = vpop.f32.mrf.mxu0
        %v884 = vadd.f32 0.0, %v883
        %v885 = vpop.f32.mrf.mxu0
        %v886 = vadd.f32 0.0, %v885
        %887 = vmatmul.bf16.gmra.mxu0 %v850
        %v888 = vpop.f32.mrf.mxu0
        %v889 = vadd.f32 0.0, %v888
        %v890 = vpop.f32.mrf.mxu0
        %v891 = vadd.f32 0.0, %v890
        %892 = vmatmul.bf16.gmra.mxu0 %v853
        %v893 = vpop.f32.mrf.mxu0
        %v894 = vadd.f32 0.0, %v893
        %v895 = vpop.f32.mrf.mxu0
        %v896 = vadd.f32 0.0, %v895
        %897 = vmatmul.bf16.gmra.mxu0 %v856
        %v898 = vpop.f32.mrf.mxu0
        %v899 = vadd.f32 0.0, %v898
        %v900 = vpop.f32.mrf.mxu0
        %v901 = vadd.f32 0.0, %v900
        %902 = vmatmul.bf16.gmra.mxu0 %v859
        %v903 = vpop.f32.mrf.mxu0
        %v904 = vadd.f32 0.0, %v903
        %v905 = vpop.f32.mrf.mxu0
        %v906 = vadd.f32 0.0, %v905
        %907 = vmatmul.bf16.gmra.mxu0 %v862
        %v908 = vpop.f32.mrf.mxu0
        %v909 = vadd.f32 0.0, %v908
        %v910 = vpop.f32.mrf.mxu0
        %v911 = vadd.f32 0.0, %v910
        %912 = vdwg.mxu0
        %v913 = vadd.f32 %v729, %v874
        %v914 = vadd.f32 %v731, %v876
        %v915 = vadd.f32 %v734, %v879
        %v916 = vadd.f32 %v736, %v881
        %v917 = vadd.f32 %v739, %v884
        %v918 = vadd.f32 %v741, %v886
        %v919 = vadd.f32 %v744, %v889
        %v920 = vadd.f32 %v746, %v891
        %v921 = vadd.f32 %v749, %v894
        %v922 = vadd.f32 %v751, %v896
        %v923 = vadd.f32 %v754, %v899
        %v924 = vadd.f32 %v756, %v901
        %v925 = vadd.f32 %v759, %v904
        %v926 = vadd.f32 %v761, %v906
        %v927 = vadd.f32 %v764, %v909
        %v928 = vadd.f32 %v766, %v911
        %v929 = vld [vmem:[%s7] sm:$0x1]
        %v931 = vperm.slane %v929, 0
        %v933 = vadd.f32 %v913, %v931
        %v934 = vadd.f32 %v914, %v931
        %v935 = vadd.f32 %v915, %v931
        %v936 = vadd.f32 %v916, %v931
        %v937 = vadd.f32 %v917, %v931
        %v938 = vadd.f32 %v918, %v931
        %v939 = vadd.f32 %v919, %v931
        %v940 = vadd.f32 %v920, %v931
        %v941 = vadd.f32 %v921, %v931
        %v942 = vadd.f32 %v922, %v931
        %v943 = vadd.f32 %v923, %v931
        %v944 = vadd.f32 %v924, %v931
        %v945 = vadd.f32 %v925, %v931
        %v946 = vadd.f32 %v926, %v931
        %v947 = vadd.f32 %v927, %v931
        %v948 = vadd.f32 %v928, %v931
        %vm949 = vcmp.gt.f32.partialorder %v933, 0.0
        %vm950 = vcmp.gt.f32.partialorder %v934, 0.0
        %vm951 = vcmp.gt.f32.partialorder %v935, 0.0
        %vm952 = vcmp.gt.f32.partialorder %v936, 0.0
        %vm953 = vcmp.gt.f32.partialorder %v937, 0.0
        %vm954 = vcmp.gt.f32.partialorder %v938, 0.0
        %vm955 = vcmp.gt.f32.partialorder %v939, 0.0
        %vm956 = vcmp.gt.f32.partialorder %v940, 0.0
        %vm957 = vcmp.gt.f32.partialorder %v941, 0.0
        %vm958 = vcmp.gt.f32.partialorder %v942, 0.0
        %vm959 = vcmp.gt.f32.partialorder %v943, 0.0
        %vm960 = vcmp.gt.f32.partialorder %v944, 0.0
        %vm961 = vcmp.gt.f32.partialorder %v945, 0.0
        %vm962 = vcmp.gt.f32.partialorder %v946, 0.0
        %vm963 = vcmp.gt.f32.partialorder %v947, 0.0
        %vm964 = vcmp.gt.f32.partialorder %v948, 0.0
        %v965 = vmul.f32 %v933, 0.2
        %v966 = vmul.f32 %v934, 0.2
        %v967 = vmul.f32 %v935, 0.2
        %v968 = vmul.f32 %v936, 0.2
        %v969 = vmul.f32 %v937, 0.2
        %v970 = vmul.f32 %v938, 0.2
        %v971 = vmul.f32 %v939, 0.2
        %v972 = vmul.f32 %v940, 0.2
        %v973 = vmul.f32 %v941, 0.2
        %v974 = vmul.f32 %v942, 0.2
        %v975 = vmul.f32 %v943, 0.2
        %v976 = vmul.f32 %v944, 0.2
        %v977 = vmul.f32 %v945, 0.2
        %v978 = vmul.f32 %v946, 0.2
        %v979 = vmul.f32 %v947, 0.2
        %v980 = vmul.f32 %v948, 0.2
        %v981 = vsel %vm949, %v933, %v965
        %v982 = vsel %vm950, %v934, %v966
        %v983 = vsel %vm951, %v935, %v967
        %v984 = vsel %vm952, %v936, %v968
        %v985 = vsel %vm953, %v937, %v969
        %v986 = vsel %vm954, %v938, %v970
        %v987 = vsel %vm955, %v939, %v971
        %v988 = vsel %vm956, %v940, %v972
        %v989 = vsel %vm957, %v941, %v973
        %v990 = vsel %vm958, %v942, %v974
        %v991 = vsel %vm959, %v943, %v975
        %v992 = vsel %vm960, %v944, %v976
        %v993 = vsel %vm961, %v945, %v977
        %v994 = vsel %vm962, %v946, %v978
        %v995 = vsel %vm963, %v947, %v979
        %v996 = vsel %vm964, %v948, %v980
        %v997 = vld [vmem:[%s8] sm:$0x1]
        %v999 = vperm.slane %v997, 0
        %v1001 = vmul.f32 %v981, %v999
        %v1002 = vmul.f32 %v982, %v999
        %v1003 = vmul.f32 %v983, %v999
        %v1004 = vmul.f32 %v984, %v999
        %v1005 = vmul.f32 %v985, %v999
        %v1006 = vmul.f32 %v986, %v999
        %v1007 = vmul.f32 %v987, %v999
        %v1008 = vmul.f32 %v988, %v999
        %v1009 = vmul.f32 %v989, %v999
        %v1010 = vmul.f32 %v990, %v999
        %v1011 = vmul.f32 %v991, %v999
        %v1012 = vmul.f32 %v992, %v999
        %v1013 = vmul.f32 %v993, %v999
        %v1014 = vmul.f32 %v994, %v999
        %v1015 = vmul.f32 %v995, %v999
        %v1016 = vmul.f32 %v996, %v999
        %v1018 = vsel %vm569, %v1001, 0
        %v1021 = vsel %vm569, %v1002, 0
        %v1024 = vsel %vm569, %v1003, 0
        %v1027 = vsel %vm569, %v1004, 0
        %v1030 = vsel %vm569, %v1005, 0
        %v1033 = vsel %vm569, %v1006, 0
        %v1036 = vsel %vm569, %v1007, 0
        %v1039 = vsel %vm569, %v1008, 0
        %v1042 = vsel %vm569, %v1009, 0
        %v1045 = vsel %vm569, %v1010, 0
        %v1048 = vsel %vm569, %v1011, 0
        %v1051 = vsel %vm569, %v1012, 0
        %v1054 = vsel %vm569, %v1013, 0
        %v1057 = vsel %vm569, %v1014, 0
        %v1060 = vsel %vm569, %v1015, 0
        %v1063 = vsel %vm569, %v1016, 0
        %1065 = vmatpush.msra.mxu0 0.0
        %1066 = vmatpush.msra.mxu0 0.0
        %1067 = vmatpush.msra.mxu0 0.0
        %1068 = vmatpush.msra.mxu0 0.0
        %1069 = vmatpush.msra.mxu0 0.0
        %1070 = vmatpush.msra.mxu0 0.0
        %1071 = vmatpush.msra.mxu0 0.0
        %1072 = vmatpush.msra.mxu0 0.0
        %1073 = vmatpush.msra.mxu0 0.0
        %1074 = vmatpush.msra.mxu0 0.0
        %1075 = vmatpush.msra.mxu0 0.0
        %1076 = vmatpush.msra.mxu0 0.0
        %1077 = vmatpush.msra.mxu0 %v476
        %1078 = vmatpush.msra.mxu0 %v475
        %1079 = vmatpush.msra.mxu0 %v474
        %1080 = vmatpush.msra.mxu0 %v473
        %1081 = vmatmul.f32.gmra.mxu0 %v1018
        %v1082 = vpop.f32.mrf.mxu0
        %v1083 = vadd.f32 0.0, %v1082
        %1084 = vmatmul.f32.gmra.mxu0 %v1021
        %v1085 = vpop.f32.mrf.mxu0
        %v1086 = vadd.f32 0.0, %v1085
        %1087 = vmatmul.f32.gmra.mxu0 %v1024
        %v1088 = vpop.f32.mrf.mxu0
        %v1089 = vadd.f32 0.0, %v1088
        %1090 = vmatmul.f32.gmra.mxu0 %v1027
        %v1091 = vpop.f32.mrf.mxu0
        %v1092 = vadd.f32 0.0, %v1091
        %1093 = vmatmul.f32.gmra.mxu0 %v1030
        %v1094 = vpop.f32.mrf.mxu0
        %v1095 = vadd.f32 0.0, %v1094
        %1096 = vmatmul.f32.gmra.mxu0 %v1033
        %v1097 = vpop.f32.mrf.mxu0
        %v1098 = vadd.f32 0.0, %v1097
        %1099 = vmatmul.f32.gmra.mxu0 %v1036
        %v1100 = vpop.f32.mrf.mxu0
        %v1101 = vadd.f32 0.0, %v1100
        %1102 = vmatmul.f32.gmra.mxu0 %v1039
        %v1103 = vpop.f32.mrf.mxu0
        %v1104 = vadd.f32 0.0, %v1103
        %1105 = vmatmul.f32.gmra.mxu0 %v1042
        %v1106 = vpop.f32.mrf.mxu0
        %v1107 = vadd.f32 0.0, %v1106
        %1108 = vmatmul.f32.gmra.mxu0 %v1045
        %v1109 = vpop.f32.mrf.mxu0
        %v1110 = vadd.f32 0.0, %v1109
        %1111 = vmatmul.f32.gmra.mxu0 %v1048
        %v1112 = vpop.f32.mrf.mxu0
        %v1113 = vadd.f32 0.0, %v1112
        %1114 = vmatmul.f32.gmra.mxu0 %v1051
        %v1115 = vpop.f32.mrf.mxu0
        %v1116 = vadd.f32 0.0, %v1115
        %1117 = vmatmul.f32.gmra.mxu0 %v1054
        %v1118 = vpop.f32.mrf.mxu0
        %v1119 = vadd.f32 0.0, %v1118
        %1120 = vmatmul.f32.gmra.mxu0 %v1057
        %v1121 = vpop.f32.mrf.mxu0
        %v1122 = vadd.f32 0.0, %v1121
        %1123 = vmatmul.f32.gmra.mxu0 %v1060
        %v1124 = vpop.f32.mrf.mxu0
        %v1125 = vadd.f32 0.0, %v1124
        %1126 = vmatmul.f32.gmra.mxu0 %v1063
        %v1127 = vpop.f32.mrf.mxu0
        %v1128 = vadd.f32 0.0, %v1127
        %1129 = vdwg.mxu0
        %v1130 = vld [vmem:[%s9] sm:$0xf]
        %v1131 = vld [vmem:[%s9 + $0x4] sm:$0xf]
        %v1132 = vld [vmem:[%s9 + $0x8] sm:$0xf]
        %v1133 = vld [vmem:[%s9 + $0xc] sm:$0xf]
        %v1134 = vld [vmem:[%s10] sm:$0x1]
        %v1136 = vperm.slane %v1134, 0
        %v1142 = vunpack.c.l.b16 %v1130
        %v1143 = vunpack.c.l.b16 %v1131
        %v1144 = vunpack.c.l.b16 %v1132
        %v1145 = vunpack.c.l.b16 %v1133
        %v1146 = vpack.c.b16 %v1143, %v1142
        %v1147 = vpack.c.b16 %v1145, %v1144
        %1150 = vmatpush.bf16.msra.mxu0 0
        %1151 = vmatpush.bf16.msra.mxu0 0
        %1152 = vmatpush.bf16.msra.mxu0 0
        %1153 = vmatpush.bf16.msra.mxu0 0
        %1154 = vmatpush.bf16.msra.mxu0 0
        %1155 = vmatpush.bf16.msra.mxu0 0
        %1156 = vmatpush.bf16.msra.mxu0 %v1147
        %1157 = vmatpush.bf16.msra.mxu0 %v1146
        %1158 = vmatmul.bf16.gmra.mxu0 %v841
        %v1159 = vpop.f32.mrf.mxu0
        %v1160 = vadd.f32 %v1136, %v1159
        %v1161 = vpop.f32.mrf.mxu0
        %v1162 = vadd.f32 %v1136, %v1161
        %1163 = vmatmul.bf16.gmra.mxu0 %v844
        %v1164 = vpop.f32.mrf.mxu0
        %v1165 = vadd.f32 %v1136, %v1164
        %v1166 = vpop.f32.mrf.mxu0
        %v1167 = vadd.f32 %v1136, %v1166
        %1168 = vmatmul.bf16.gmra.mxu0 %v847
        %v1169 = vpop.f32.mrf.mxu0
        %v1170 = vadd.f32 %v1136, %v1169
        %v1171 = vpop.f32.mrf.mxu0
        %v1172 = vadd.f32 %v1136, %v1171
        %1173 = vmatmul.bf16.gmra.mxu0 %v850
        %v1174 = vpop.f32.mrf.mxu0
        %v1175 = vadd.f32 %v1136, %v1174
        %v1176 = vpop.f32.mrf.mxu0
        %v1177 = vadd.f32 %v1136, %v1176
        %1178 = vmatmul.bf16.gmra.mxu0 %v853
        %v1179 = vpop.f32.mrf.mxu0
        %v1180 = vadd.f32 %v1136, %v1179
        %v1181 = vpop.f32.mrf.mxu0
        %v1182 = vadd.f32 %v1136, %v1181
        %1183 = vmatmul.bf16.gmra.mxu0 %v856
        %v1184 = vpop.f32.mrf.mxu0
        %v1185 = vadd.f32 %v1136, %v1184
        %v1186 = vpop.f32.mrf.mxu0
        %v1187 = vadd.f32 %v1136, %v1186
        %1188 = vmatmul.bf16.gmra.mxu0 %v859
        %v1189 = vpop.f32.mrf.mxu0
        %v1190 = vadd.f32 %v1136, %v1189
        %v1191 = vpop.f32.mrf.mxu0
        %v1192 = vadd.f32 %v1136, %v1191
        %1193 = vmatmul.bf16.gmra.mxu0 %v862
        %v1194 = vpop.f32.mrf.mxu0
        %v1195 = vadd.f32 %v1136, %v1194
        %v1196 = vpop.f32.mrf.mxu0
        %v1197 = vadd.f32 %v1136, %v1196
        %1198 = vdwg.mxu0
        %vm1199 = vcmask 64512
        %v1200 = vsel %vm1199, %v1083, -inf
        %v1201 = vsel %vm1199, %v1086, -inf
        %v1202 = vsel %vm1199, %v1089, -inf
        %v1203 = vsel %vm1199, %v1092, -inf
        %v1204 = vsel %vm1199, %v1095, -inf
        %v1205 = vmax.f32 %v1200, %v1204
        %v1206 = vsel %vm1199, %v1098, -inf
        %v1207 = vmax.f32 %v1201, %v1206
        %v1208 = vsel %vm1199, %v1101, -inf
        %v1209 = vmax.f32 %v1202, %v1208
        %v1210 = vsel %vm1199, %v1104, -inf
        %v1211 = vmax.f32 %v1203, %v1210
        %v1212 = vsel %vm1199, %v1107, -inf
        %v1213 = vmax.f32 %v1205, %v1212
        %v1214 = vsel %vm1199, %v1110, -inf
        %v1215 = vmax.f32 %v1207, %v1214
        %v1216 = vsel %vm1199, %v1113, -inf
        %v1217 = vmax.f32 %v1209, %v1216
        %v1218 = vsel %vm1199, %v1116, -inf
        %v1219 = vmax.f32 %v1211, %v1218
        %v1220 = vsel %vm1199, %v1119, -inf
        %v1221 = vmax.f32 %v1213, %v1220
        %v1222 = vsel %vm1199, %v1122, -inf
        %v1223 = vmax.f32 %v1215, %v1222
        %v1224 = vsel %vm1199, %v1125, -inf
        %v1225 = vmax.f32 %v1217, %v1224
        %v1226 = vsel %vm1199, %v1128, -inf
        %v1227 = vmax.f32 %v1219, %v1226
        %v1228 = vmax.f32 %v1221, %v1223
        %v1229 = vmax.f32 %v1225, %v1227
        %v1230 = vmax.f32 %v1228, %v1229
        %v1231 = vrot.slane %v1230, 4
        %v1232 = vmax.f32 %v1230, %v1231
        %v1233 = vrot.slane %v1232, 2
        %v1234 = vmax.f32 %v1232, %v1233
        %v1235 = vrot.slane %v1234, 1
        %v1236 = vmax.f32 %v1234, %v1235
        %v1237 = vld [vmem:[#allocation2] sm:$0x1]
        %v1238 = vmax.f32 %v1237, %v1236
        %v1239 = vsub.f32 %v1237, %v1238
        %v1240 = vmul.f32 %v1239, 1.442695
        %v1241 = vpow.pop %v1240
        %v1243 = vsel %vm1199, %v1241, 0
        %v1246 = vsel %vm1199, %v473, 0
        %v1249 = vsel %vm1199, %v474, 0
        %v1252 = vsel %vm1199, %v475, 0
        %v1255 = vsel %vm1199, %v476, 0
        %1257 = vmatpush.xpose.msra.mxu0 0.0
        %1258 = vmatpush.xpose.msra.mxu0 0.0
        %1259 = vmatpush.xpose.msra.mxu0 0.0
        %1260 = vmatpush.xpose.msra.mxu0 0.0
        %1261 = vmatpush.xpose.msra.mxu0 0.0
        %1262 = vmatpush.xpose.msra.mxu0 0.0
        %1263 = vmatpush.xpose.msra.mxu0 0.0
        %1264 = vmatpush.xpose.msra.mxu0 0.0
        %1265 = vmatpush.xpose.msra.mxu0 0.0
        %1266 = vmatpush.xpose.msra.mxu0 0.0
        %1267 = vmatpush.xpose.msra.mxu0 0.0
        %1268 = vmatpush.xpose.msra.mxu0 0.0
        %1269 = vmatpush.xpose.msra.mxu0 %v1255
        %1270 = vmatpush.xpose.msra.mxu0 %v1252
        %1271 = vmatpush.xpose.msra.mxu0 %v1249
        %1272 = vmatpush.xpose.msra.mxu0 %v1246
        %1273 = vmatmul.f32.gmra.mxu0 %v1243
        %v1274 = vpop.f32.mrf.mxu0
        %v1275 = vadd.f32 0.0, %v1274
        %1276 = vdwg.mxu0
        %vm1277 = vcmask 57344
        %1278 = vst.msk [vmem:[#allocation2] sm:$0x1] %vm1277, %v1238
        %v1279 = vld [vmem:[#allocation3] sm:$0xff]
        %v1280 = vld [vmem:[#allocation3 + $0x8] sm:$0xff]
        %v1281 = vperm.slane %v1241, 0
        %v1283 = vmul.f32 %v1279, %v1281
        %v1284 = vmul.f32 %v1280, %v1281
        %1285 = vst.msk [vmem:[#allocation3] sm:$0xff] %vm1199, %v1283
        %1286 = vst.msk [vmem:[#allocation3 + $0x8] sm:$0xff] %vm1199, %v1284
        %v1287 = vld [vmem:[#allocation4] sm:$0xff]
        %v1288 = vld [vmem:[#allocation4 + $0x8] sm:$0xff]
        %v1289 = vperm.slane %v1275, 0
        %v1290 = vmul.f32 %v1287, %v1289
        %v1291 = vmul.f32 %v1288, %v1289
        %1292 = vst.msk [vmem:[#allocation4] sm:$0xff] %vm569, %v1290
        %1293 = vst.msk [vmem:[#allocation4 + $0x8] sm:$0xff] %vm569, %v1291
        %v1295 = vperm.slane %v1238, 0
        %v1297 = vsub.f32 %v1083, %v1295
        %v1298 = vsub.f32 %v1086, %v1295
        %v1299 = vsub.f32 %v1089, %v1295
        %v1300 = vsub.f32 %v1092, %v1295
        %v1301 = vsub.f32 %v1095, %v1295
        %v1302 = vsub.f32 %v1098, %v1295
        %v1303 = vsub.f32 %v1101, %v1295
        %v1304 = vsub.f32 %v1104, %v1295
        %v1305 = vsub.f32 %v1107, %v1295
        %v1306 = vsub.f32 %v1110, %v1295
        %v1307 = vsub.f32 %v1113, %v1295
        %v1308 = vsub.f32 %v1116, %v1295
        %v1309 = vsub.f32 %v1119, %v1295
        %v1310 = vsub.f32 %v1122, %v1295
        %v1311 = vsub.f32 %v1125, %v1295
        %v1312 = vsub.f32 %v1128, %v1295
        %v1313 = vmul.f32 %v1297, 1.442695
        %v1314 = vpow.pop %v1313
        %v1315 = vmul.f32 %v1298, 1.442695
        %v1316 = vpow.pop %v1315
        %v1317 = vmul.f32 %v1299, 1.442695
        %v1318 = vpow.pop %v1317
        %v1319 = vmul.f32 %v1300, 1.442695
        %v1320 = vpow.pop %v1319
        %v1321 = vmul.f32 %v1301, 1.442695
        %v1322 = vpow.pop %v1321
        %v1323 = vmul.f32 %v1302, 1.442695
        %v1324 = vpow.pop %v1323
        %v1325 = vmul.f32 %v1303, 1.442695
        %v1326 = vpow.pop %v1325
        %v1327 = vmul.f32 %v1304, 1.442695
        %v1328 = vpow.pop %v1327
        %v1329 = vmul.f32 %v1305, 1.442695
        %v1330 = vpow.pop %v1329
        %v1331 = vmul.f32 %v1306, 1.442695
        %v1332 = vpow.pop %v1331
        %v1333 = vmul.f32 %v1307, 1.442695
        %v1334 = vpow.pop %v1333
        %v1335 = vmul.f32 %v1308, 1.442695
        %v1336 = vpow.pop %v1335
        %v1337 = vmul.f32 %v1309, 1.442695
        %v1338 = vpow.pop %v1337
        %v1339 = vmul.f32 %v1310, 1.442695
        %v1340 = vpow.pop %v1339
        %v1341 = vmul.f32 %v1311, 1.442695
        %v1342 = vpow.pop %v1341
        %v1343 = vmul.f32 %v1312, 1.442695
        %v1344 = vpow.pop %v1343
        %v1346 = vsel %vm1199, %v1314, 0
        %v1349 = vsel %vm1199, %v1316, 0
        %v1352 = vsel %vm1199, %v1318, 0
        %v1355 = vsel %vm1199, %v1320, 0
        %v1358 = vsel %vm1199, %v1322, 0
        %v1361 = vsel %vm1199, %v1324, 0
        %v1364 = vsel %vm1199, %v1326, 0
        %v1367 = vsel %vm1199, %v1328, 0
        %v1370 = vsel %vm1199, %v1330, 0
        %v1373 = vsel %vm1199, %v1332, 0
        %v1376 = vsel %vm1199, %v1334, 0
        %v1379 = vsel %vm1199, %v1336, 0
        %v1382 = vsel %vm1199, %v1338, 0
        %v1385 = vsel %vm1199, %v1340, 0
        %v1388 = vsel %vm1199, %v1342, 0
        %v1391 = vsel %vm1199, %v1344, 0
        %1393 = vmatpush.xpose.msra.mxu0 0.0
        %1394 = vmatpush.xpose.msra.mxu0 0.0
        %1395 = vmatpush.xpose.msra.mxu0 0.0
        %1396 = vmatpush.xpose.msra.mxu0 0.0
        %1397 = vmatpush.xpose.msra.mxu0 0.0
        %1398 = vmatpush.xpose.msra.mxu0 0.0
        %1399 = vmatpush.xpose.msra.mxu0 0.0
        %1400 = vmatpush.xpose.msra.mxu0 0.0
        %1401 = vmatpush.xpose.msra.mxu0 0.0
        %1402 = vmatpush.xpose.msra.mxu0 0.0
        %1403 = vmatpush.xpose.msra.mxu0 0.0
        %1404 = vmatpush.xpose.msra.mxu0 0.0
        %1405 = vmatpush.xpose.msra.mxu0 %v1255
        %1406 = vmatpush.xpose.msra.mxu0 %v1252
        %1407 = vmatpush.xpose.msra.mxu0 %v1249
        %1408 = vmatpush.xpose.msra.mxu0 %v1246
        %1409 = vmatmul.f32.gmra.mxu0 %v1346
        %v1410 = vpop.f32.mrf.mxu0
        %v1411 = vadd.f32 0.0, %v1410
        %1412 = vmatmul.f32.gmra.mxu0 %v1349
        %v1413 = vpop.f32.mrf.mxu0
        %v1414 = vadd.f32 0.0, %v1413
        %1415 = vmatmul.f32.gmra.mxu0 %v1352
        %v1416 = vpop.f32.mrf.mxu0
        %v1417 = vadd.f32 0.0, %v1416
        %1418 = vmatmul.f32.gmra.mxu0 %v1355
        %v1419 = vpop.f32.mrf.mxu0
        %v1420 = vadd.f32 0.0, %v1419
        %1421 = vmatmul.f32.gmra.mxu0 %v1358
        %v1422 = vpop.f32.mrf.mxu0
        %v1423 = vadd.f32 0.0, %v1422
        %1424 = vmatmul.f32.gmra.mxu0 %v1361
        %v1425 = vpop.f32.mrf.mxu0
        %v1426 = vadd.f32 0.0, %v1425
        %1427 = vmatmul.f32.gmra.mxu0 %v1364
        %v1428 = vpop.f32.mrf.mxu0
        %v1429 = vadd.f32 0.0, %v1428
        %1430 = vmatmul.f32.gmra.mxu0 %v1367
        %v1431 = vpop.f32.mrf.mxu0
        %v1432 = vadd.f32 0.0, %v1431
        %1433 = vmatmul.f32.gmra.mxu0 %v1370
        %v1434 = vpop.f32.mrf.mxu0
        %v1435 = vadd.f32 0.0, %v1434
        %1436 = vmatmul.f32.gmra.mxu0 %v1373
        %v1437 = vpop.f32.mrf.mxu0
        %v1438 = vadd.f32 0.0, %v1437
        %1439 = vmatmul.f32.gmra.mxu0 %v1376
        %v1440 = vpop.f32.mrf.mxu0
        %v1441 = vadd.f32 0.0, %v1440
        %1442 = vmatmul.f32.gmra.mxu0 %v1379
        %v1443 = vpop.f32.mrf.mxu0
        %v1444 = vadd.f32 0.0, %v1443
        %1445 = vmatmul.f32.gmra.mxu0 %v1382
        %v1446 = vpop.f32.mrf.mxu0
        %v1447 = vadd.f32 0.0, %v1446
        %1448 = vmatmul.f32.gmra.mxu0 %v1385
        %v1449 = vpop.f32.mrf.mxu0
        %v1450 = vadd.f32 0.0, %v1449
        %1451 = vmatmul.f32.gmra.mxu0 %v1388
        %v1452 = vpop.f32.mrf.mxu0
        %v1453 = vadd.f32 0.0, %v1452
        %1454 = vmatmul.f32.gmra.mxu0 %v1391
        %v1455 = vpop.f32.mrf.mxu0
        %v1456 = vadd.f32 0.0, %v1455
        %1457 = vdwg.mxu0
        %v1458 = vlaneseq
        %v1459 = vshrl.u32 %v1458, 7
        %v1460 = vadd.s32 %v1459, 8
        %v1461 = vld [vmem:[%s441] sm:$0x1]
        %v1462 = vperm.slane %v1461, 0
        %vm1463 = vcmp.eq.s32.totalorder %v1462, %v1459
        %vm1464 = vcmp.eq.s32.totalorder %v1462, %v1460
        %v1465 = vsel %vm1463, 1, 0
        %v1466 = vsel %vm1464, 1, 0
        %v1467 = vcvt.s32.f32 %v1465
        %v1468 = vcvt.s32.f32 %v1466
        %v1469 = vld [vmem:[#allocation3] sm:$0xff]
        %v1470 = vld [vmem:[#allocation3 + $0x8] sm:$0xff]
        %1471 = vmatpush.msra.mxu0 %v1344
        %1472 = vmatpush.msra.mxu0 %v1342
        %1473 = vmatpush.msra.mxu0 %v1340
        %1474 = vmatpush.msra.mxu0 %v1338
        %1475 = vmatpush.msra.mxu0 %v1336
        %1476 = vmatpush.msra.mxu0 %v1334
        %1477 = vmatpush.msra.mxu0 %v1332
        %1478 = vmatpush.msra.mxu0 %v1330
        %1479 = vmatpush.msra.mxu0 %v1328
        %1480 = vmatpush.msra.mxu0 %v1326
        %1481 = vmatpush.msra.mxu0 %v1324
        %1482 = vmatpush.msra.mxu0 %v1322
        %1483 = vmatpush.msra.mxu0 %v1320
        %1484 = vmatpush.msra.mxu0 %v1318
        %1485 = vmatpush.msra.mxu0 %v1316
        %1486 = vmatpush.msra.mxu0 %v1314
        %1487 = vmatmul.f32.gmra.mxu0 %v1467
        %v1488 = vpop.f32.mrf.mxu0
        %v1489 = vadd.f32 0.0, %v1488
        %1490 = vmatmul.f32.gmra.mxu0 %v1468
        %v1491 = vpop.f32.mrf.mxu0
        %v1492 = vadd.f32 0.0, %v1491
        %1493 = vdwg.mxu0
        %v1494 = vadd.f32 %v1469, %v1489
        %v1495 = vadd.f32 %v1470, %v1492
        %1496 = vst.msk [vmem:[#allocation3] sm:$0xff] %vm1199, %v1494
        %1497 = vst.msk [vmem:[#allocation3 + $0x8] sm:$0xff] %vm1199, %v1495
        %v1498 = vld [vmem:[#allocation4] sm:$0xff]
        %v1499 = vld [vmem:[#allocation4 + $0x8] sm:$0xff]
        %v1500 = vmul.f32 %v1411, %v1160
        %v1501 = vmul.f32 %v1414, %v1162
        %v1502 = vmul.f32 %v1417, %v1165
        %v1503 = vmul.f32 %v1420, %v1167
        %v1504 = vmul.f32 %v1423, %v1170
        %v1505 = vmul.f32 %v1426, %v1172
        %v1506 = vmul.f32 %v1429, %v1175
        %v1507 = vmul.f32 %v1432, %v1177
        %v1508 = vmul.f32 %v1435, %v1180
        %v1509 = vmul.f32 %v1438, %v1182
        %v1510 = vmul.f32 %v1441, %v1185
        %v1511 = vmul.f32 %v1444, %v1187
        %v1512 = vmul.f32 %v1447, %v1190
        %v1513 = vmul.f32 %v1450, %v1192
        %v1514 = vmul.f32 %v1453, %v1195
        %v1515 = vmul.f32 %v1456, %v1197
        %1516 = vmatpush.msra.mxu0 %v1515
        %1517 = vmatpush.msra.mxu0 %v1514
        %1518 = vmatpush.msra.mxu0 %v1513
        %1519 = vmatpush.msra.mxu0 %v1512
        %1520 = vmatpush.msra.mxu0 %v1511
        %1521 = vmatpush.msra.mxu0 %v1510
        %1522 = vmatpush.msra.mxu0 %v1509
        %1523 = vmatpush.msra.mxu0 %v1508
        %1524 = vmatpush.msra.mxu0 %v1507
        %1525 = vmatpush.msra.mxu0 %v1506
        %1526 = vmatpush.msra.mxu0 %v1505
        %1527 = vmatpush.msra.mxu0 %v1504
        %1528 = vmatpush.msra.mxu0 %v1503
        %1529 = vmatpush.msra.mxu0 %v1502
        %1530 = vmatpush.msra.mxu0 %v1501
        %1531 = vmatpush.msra.mxu0 %v1500
        %1532 = vmatmul.f32.gmra.mxu0 %v1467
        %v1533 = vpop.f32.mrf.mxu0
        %v1534 = vadd.f32 0.0, %v1533
        %1535 = vmatmul.f32.gmra.mxu0 %v1468
        %v1536 = vpop.f32.mrf.mxu0
        %v1537 = vadd.f32 0.0, %v1536
        %1538 = vdwg.mxu0
        %v1539 = vadd.f32 %v1498, %v1534
        %v1540 = vadd.f32 %v1499, %v1537
        %1541 = vst.msk [vmem:[#allocation4] sm:$0xff] %vm569, %v1539
        %1542 = vst.msk [vmem:[#allocation4 + $0x8] sm:$0xff] %vm569, %v1540
        %p1543 = scmp.eq.s32.totalorder %s24, 1
        // Predicated region
        $region73: #{tpu_custom_call.1} parent=67 // pred_check
          %p1544 = pneg %p1543
        $region74: #{tpu_custom_call.1} parent=67 // pred_check_branch
          %1546 = sbr.rel (%p1544) target = $region76
        $region75: #{tpu_custom_call.1} parent=67 // pred_region
          %v1547 = vld [vmem:[#allocation3] sm:$0xff]
          %v1548 = vld [vmem:[#allocation3 + $0x8] sm:$0xff]
          %v1549 = vld [vmem:[#allocation4] sm:$0xff]
          %v1550 = vld [vmem:[#allocation4 + $0x8] sm:$0xff]
          %v1552 = vsel %vm1199, %v1547, 0
          %v1555 = vsel %vm1199, %v1548, 0
          %1557 = vmatpush.xpose.msra.mxu0 0.0
          %1558 = vmatpush.xpose.msra.mxu0 0.0
          %1559 = vmatpush.xpose.msra.mxu0 0.0
          %1560 = vmatpush.xpose.msra.mxu0 0.0
          %1561 = vmatpush.xpose.msra.mxu0 0.0
          %1562 = vmatpush.xpose.msra.mxu0 0.0
          %1563 = vmatpush.xpose.msra.mxu0 0.0
          %1564 = vmatpush.xpose.msra.mxu0 0.0
          %1565 = vmatpush.xpose.msra.mxu0 0.0
          %1566 = vmatpush.xpose.msra.mxu0 0.0
          %1567 = vmatpush.xpose.msra.mxu0 0.0
          %1568 = vmatpush.xpose.msra.mxu0 0.0
          %1569 = vmatpush.xpose.msra.mxu0 %v1255
          %1570 = vmatpush.xpose.msra.mxu0 %v1252
          %1571 = vmatpush.xpose.msra.mxu0 %v1249
          %1572 = vmatpush.xpose.msra.mxu0 %v1246
          %1573 = vmatmul.f32.gmra.mxu0 %v1552
          %v1574 = vpop.f32.mrf.mxu0
          %v1575 = vadd.f32 1e-16, %v1574
          %1576 = vmatmul.f32.gmra.mxu0 %v1555
          %v1577 = vpop.f32.mrf.mxu0
          %v1578 = vadd.f32 1e-16, %v1577
          %1579 = vdwg.mxu0
          %v1580 = vrcp.pop %v1575
          %v1581 = vrcp.pop %v1578
          %v1582 = vmul.f32 %v1549, %v1580
          %v1583 = vmul.f32 %v1550, %v1581
          %1584 = vst.msk [vmem:[#allocation4] sm:$0xff] %vm569, %v1582
          %1585 = vst.msk [vmem:[#allocation4 + $0x8] sm:$0xff] %vm569, %v1583
        $region76: #{tpu_custom_call.1} parent=67 // pred_fallthru
          _
        // Predicated region
        $region77: #{tpu_custom_call.1} parent=67 // pred_check
          %p1586 = pneg %p309
        $region78: #{tpu_custom_call.1} parent=67 // pred_check_branch
          %1588 = sbr.rel (%p1586) target = $region80
        $region79: #{tpu_custom_call.1} parent=67 // pred_region
          %1590 = vsyncadd [#allocation5], 0
          %s1591 = sshll.u32 [#allocation4], 4
          %s1592 = int_to_ptr.vmem [resolvable:$true] %s1591
          %s1593 = sshll.u32 %s12, 4
          %s1594 = int_to_ptr.hbm [resolvable:$true] %s1593
          %1599 = dma.vmem_to_hbm [thread:$0]  %s1592, 256, %s1594, [#allocation5], 128, 128, 8
        $region80: #{tpu_custom_call.1} parent=67 // pred_fallthru
          _
        // Predicated region
        $region81: #{tpu_custom_call.1} parent=67 // pred_check
          %p1600 = pneg %p309
        $region82: #{tpu_custom_call.1} parent=67 // pred_check_branch
          %1602 = sbr.rel (%p1600) target = $region84
        $region83: #{tpu_custom_call.1} parent=67 // pred_region
          %1604 = dma.done [#allocation5], 256
        $region84: #{tpu_custom_call.1} parent=67 // pred_fallthru
          _
      $region68: #{tpu_custom_call.1} parent=5 // pred_fallthru
        _
      %p1605 = scmp.le.s32.totalorder 2, %s19
      // Predicated region
      $region85: #{tpu_custom_call.1} parent=5 // pred_check
        %p1606 = pneg %p1605
      $region86: #{tpu_custom_call.1} parent=5 // pred_check_branch
        %1608 = sbr.rel (%p1606) target = $region88
      $region87: #{tpu_custom_call.1} parent=5 // pred_region
        %s1609 = ssub.s32 %s19, 2
      $region88: #{tpu_custom_call.1} parent=5 // pred_fallthru
        _
    $region6: #{tpu_custom_call.1} parent=1 // loop_footer
      %s23 = sadd.s32 1, %s19
    $region7: #{tpu_custom_call.1} parent=1 // loop_footer_branch
      %18 = sbr.rel target = $region3
    $region8: #{tpu_custom_call.1} parent=1 // loop_exit
      _
    %1610 = vsyncpa [#allocation5], 1
    %s1611 = scalar_lea.sflag [#allocation5], 1
    %1612 = vsyncpa %s1611, 1

</llo_original>
